<compile_context>
chip_gen: v7x
topology: tpu7x:2x2x1
jax: 0.10.0
libtpu: 0.0.40
codegen_flags: <defaults>
</compile_context>

<pallas_src>
import jax
import jax.numpy as jnp
from jax.experimental import pallas as pl
from jax.experimental.pallas import tpu as pltpu


def _make_full_graph_kernel(K, C, tm):
    C2 = 2 * C

    def kernel(att_ref, xf_ref, *refs):
        xh_refs = refs[:K]
        (wxf_ref, wxh_ref, w2_ref, wmsg_ref, wch_ref, b_ref, out_ref) = refs[K:]

        xf = xf_ref[0]                                         # (C, tm) bf16
        att = jnp.broadcast_to(att_ref[0], (C, tm))            # (C, tm) bf16

        # Packed biases: [b1(2C); b2(C); bg(2C); bc(C)] as a (6C, 1) column.
        b_all = b_ref[...]                                     # (6C, 1) f32
        b1b = jnp.broadcast_to(b_all[:C2], (C2, tm))
        b2b = jnp.broadcast_to(b_all[C2:C2 + C], (C, tm))
        bgb = jnp.broadcast_to(b_all[C2 + C:2 * C2 + C], (C2, tm))
        bcb = jnp.broadcast_to(b_all[2 * C2 + C:], (C, tm))

        # Fused xf projection: conv1 "xf half" + GRU gate "hidden half".
        xf_proj = jnp.dot(wxf_ref[...], xf,
                          preferred_element_type=jnp.float32)  # (4C, tm) f32
        conv1_xf = xf_proj[:C2] + b1b                          # hoisted out of K loop
        gate_h = xf_proj[C2:] + bgb                            # Wg_h @ xf + bg

        wxh = wxh_ref[...]
        w2 = w2_ref[...]

        # Composition: msg = sum_k ReLU(BN2(Conv2(ReLU(BN1(Conv1(cat[xf, xh_k*att]))))))
        msg = jnp.zeros((C, tm), jnp.float32)
        for k in range(K):                                     # static unroll, K is tiny
            xp = xh_refs[k][0] * att                           # (C, tm) bf16
            y1 = conv1_xf + jnp.dot(wxh, xp,
                                    preferred_element_type=jnp.float32)
            y1 = jnp.maximum(y1, 0.0)
            y2 = jnp.dot(w2, y1.astype(jnp.bfloat16),
                         preferred_element_type=jnp.float32) + b2b
            msg = msg + jnp.maximum(y2, 0.0)

        # ConvGRU (1x1) single step: input = msg, hidden = xf.
        mproj = jnp.dot(wmsg_ref[...], msg.astype(jnp.bfloat16),
                        preferred_element_type=jnp.float32)    # (3C, tm) f32
        gates = mproj[:C2] + gate_h
        reset = jax.nn.sigmoid(gates[:C])
        update = jax.nn.sigmoid(gates[C:])
        h32 = xf.astype(jnp.float32)
        rh = (reset * h32).astype(jnp.bfloat16)
        cand = (mproj[C2:]
                + jnp.dot(wch_ref[...], rh, preferred_element_type=jnp.float32)
                + bcb)
        cnm = jnp.tanh(cand)
        out_ref[0] = h32 + update * (cnm - h32)                # == (1-u)*h + u*cnm

    return kernel


def full_graph_forward(xf, xh_list, xp_list, f_att_list, h_att_list, p_att_list,
                       params, *, tm=None):
    """Mirrors Full_Graph.forward; only xf, xh_list, h_att_list[1:3] are used."""
    del xp_list, f_att_list, p_att_list          # unused by the PyTorch forward
    N, C, H, W = xf.shape
    HW = H * W
    if tm is None:
        tm = HW
    assert HW % tm == 0 and tm % 128 == 0, "spatial tile must be a multiple of 128"
    C2 = 2 * C
    K = len(xh_list)

    # Channel-major activations: NCHW -> (N, C, H*W) is a reshape only.
    # bf16 halves HBM->VMEM bytes; matmuls accumulate in f32.
    xf_r = xf.reshape(N, C, HW).astype(jnp.bfloat16)
    xh_r = [x.reshape(N, C, HW).astype(jnp.bfloat16) for x in xh_list]
    com_att = (h_att_list[1] + h_att_list[2]).reshape(N, 1, HW).astype(jnp.bfloat16)

    # Fold eval-mode BN scales into conv weights, split the concat-weights and
    # fuse matmuls that share an operand (xf, msg) so the kernel never concats.
    w1 = params["w1"] * params["s1"][:, None]          # (2C, 2C), BN1 scale folded
    w2 = params["w2"] * params["s2"][:, None]          # (C, 2C),  BN2 scale folded
    wg, wc = params["wg"], params["wc"]

    w_xf = jnp.concatenate([w1[:, :C], wg[:, C:]], axis=0).astype(jnp.bfloat16)   # (4C, C)
    w_xh = w1[:, C:].astype(jnp.bfloat16)                                         # (2C, C)
    w_msg = jnp.concatenate([wg[:, :C], wc[:, :C]], axis=0).astype(jnp.bfloat16)  # (3C, C)
    w_ch = wc[:, C:].astype(jnp.bfloat16)                                         # (C, C)
    w2_b = w2.astype(jnp.bfloat16)                                                # (C, 2C)

    # All biases packed into one (6C, 1) f32 operand: [b1; b2; bg; bc].
    b_all = jnp.concatenate(
        [params["b1"], params["b2"], params["bg"], params["bc"]],
        axis=0).reshape(6 * C, 1).astype(jnp.float32)

    data_spec = lambda c: pl.BlockSpec((1, c, tm), lambda n, i: (n, 0, i))
    full_spec = lambda shape: pl.BlockSpec(shape, lambda n, i: (0, 0))

    out_r = pl.pallas_call(
        _make_full_graph_kernel(K, C, tm),
        out_shape=jax.ShapeDtypeStruct((N, C, HW), jnp.float32),
        grid=(N, HW // tm),
        in_specs=[data_spec(1), data_spec(C)] + [data_spec(C)] * K + [
            full_spec((4 * C, C)),    # w_xf  : [W1_xf ; Wg_h]
            full_spec((C2, C)),       # w_xh  : W1_xh
            full_spec((C, C2)),       # w2
            full_spec((3 * C, C)),    # w_msg : [Wg_msg ; Wc_msg]
            full_spec((C, C)),        # w_ch  : Wc_h
            full_spec((6 * C, 1)),    # packed biases
        ],
        out_specs=pl.BlockSpec((1, C, tm), lambda n, i: (n, 0, i)),
        compiler_params=pltpu.CompilerParams(
            dimension_semantics=("parallel", "parallel")),
    )(com_att, xf_r, *xh_r, w_xf, w_xh, w2_b, w_msg, w_ch, b_all)

    return out_r.reshape(N, C, H, W)


def make_params(hidden_dim, key):
    """Deterministic synthetic parameters (channel-major conv weights + folded
    eval-mode BN)."""
    C, C2 = hidden_dim, 2 * hidden_dim
    ks = jax.random.split(key, 8)
    eps = 1e-5

    def bn_fold(k, n):
        kg, kb, km, kv = jax.random.split(k, 4)
        gamma = 1.0 + 0.1 * jax.random.normal(kg, (n,), jnp.float32)
        beta = 0.1 * jax.random.normal(kb, (n,), jnp.float32)
        mean = 0.1 * jax.random.normal(km, (n,), jnp.float32)
        var = jnp.abs(1.0 + 0.1 * jax.random.normal(kv, (n,), jnp.float32))
        scale = gamma / jnp.sqrt(var + eps)
        bias = beta - mean * scale
        return scale, bias

    # 1x1 conv weights stored channel-major (Cout, Cin), like PyTorch (Cout, Cin, 1, 1).
    w1 = 0.1 * jax.random.normal(ks[0], (C2, C2), jnp.float32)
    w2 = 0.1 * jax.random.normal(ks[1], (C, C2), jnp.float32)
    s1, b1 = bn_fold(ks[2], C2)
    s2, b2 = bn_fold(ks[3], C)

    wg = 0.1 * jax.random.normal(ks[4], (C2, C2), jnp.float32)   # cat[msg,h] -> 2C
    bg = 0.1 * jax.random.normal(ks[5], (C2,), jnp.float32)
    wc = 0.1 * jax.random.normal(ks[6], (C, C2), jnp.float32)    # cat[msg,r*h] -> C
    bc = 0.1 * jax.random.normal(ks[7], (C,), jnp.float32)

    return dict(w1=w1, s1=s1, b1=b1, w2=w2, s2=s2, b2=b2,
                wg=wg, bg=bg, wc=wc, bc=bc)


if __name__ == "__main__":
    hidden_dim = 16
    cls_p, cls_h, cls_f = 7, 3, 2
    N, H, W = 2, 16, 16

    key = jax.random.PRNGKey(0)
    kparam, kdata = jax.random.split(key)
    params = make_params(hidden_dim, kparam)

    dk = jax.random.split(kdata, 24)
    di = iter(dk)
    feat = lambda: jax.random.normal(next(di), (N, hidden_dim, H, W), jnp.float32)
    attm = lambda: jax.nn.sigmoid(
        jax.random.normal(next(di), (N, 1, H, W), jnp.float32))

    xf = feat()
    xh_list = [feat() for _ in range(cls_h - 1)]           # 2 "half" nodes
    xp_list = [feat() for _ in range(cls_p - 1)]           # unused by forward
    f_att_list = [attm() for _ in range(cls_f)]            # unused by forward
    h_att_list = [attm() for _ in range(cls_h)]            # uses [1:3]
    p_att_list = [attm() for _ in range(cls_p)]            # unused by forward

    out = full_graph_forward(xf, xh_list, xp_list,
                             f_att_list, h_att_list, p_att_list, params)
    jax.block_until_ready(out)
    assert out.shape == (N, hidden_dim, H, W)
    print("KERNEL_OK")
</pallas_src>

<mosaic_0001>
module attributes {stable_mosaic.version = 11 : i64} {
  func.func @kernel(%arg0: i32, %arg1: i32, %arg2: memref<1x1x256xbf16, #tpu.memory_space<vmem>>, %arg3: memref<1x16x256xbf16, #tpu.memory_space<vmem>>, %arg4: memref<1x16x256xbf16, #tpu.memory_space<vmem>>, %arg5: memref<1x16x256xbf16, #tpu.memory_space<vmem>>, %arg6: memref<64x16xbf16, #tpu.memory_space<vmem>>, %arg7: memref<32x16xbf16, #tpu.memory_space<vmem>>, %arg8: memref<16x32xbf16, #tpu.memory_space<vmem>>, %arg9: memref<48x16xbf16, #tpu.memory_space<vmem>>, %arg10: memref<16x16xbf16, #tpu.memory_space<vmem>>, %arg11: memref<96x1xf32, #tpu.memory_space<vmem>>, %arg12: memref<1x16x256xf32, #tpu.memory_space<vmem>>) attributes {dimension_semantics = [#tpu.dimension_semantics<parallel>, #tpu.dimension_semantics<parallel>], iteration_bounds = array<i64: 2, 1>, scalar_prefetch = 0 : i64, scratch_operands = 0 : i64, tpu.core_type = #tpu.core_type<tc>, window_params = [{transform_indices = @transform_0, window_bounds = array<i64: 1, 1, 256>}, {transform_indices = @transform_1, window_bounds = array<i64: 1, 16, 256>}, {transform_indices = @transform_2, window_bounds = array<i64: 1, 16, 256>}, {transform_indices = @transform_3, window_bounds = array<i64: 1, 16, 256>}, {pipeline_mode = #tpu.pipeline_mode<synchronous>, transform_indices = @transform_4, window_bounds = array<i64: 64, 16>}, {pipeline_mode = #tpu.pipeline_mode<synchronous>, transform_indices = @transform_5, window_bounds = array<i64: 32, 16>}, {pipeline_mode = #tpu.pipeline_mode<synchronous>, transform_indices = @transform_6, window_bounds = array<i64: 16, 32>}, {pipeline_mode = #tpu.pipeline_mode<synchronous>, transform_indices = @transform_7, window_bounds = array<i64: 48, 16>}, {pipeline_mode = #tpu.pipeline_mode<synchronous>, transform_indices = @transform_8, window_bounds = array<i64: 16, 16>}, {pipeline_mode = #tpu.pipeline_mode<synchronous>, transform_indices = @transform_9, window_bounds = array<i64: 96, 1>}, {transform_indices = @transform_10, window_bounds = array<i64: 1, 16, 256>}]} {
    %c0 = arith.constant 0 : index
    %c0_0 = arith.constant 0 : index
    %c0_1 = arith.constant 0 : index
    %0 = vector.load %arg3[%c0, %c0_0, %c0_1] : memref<1x16x256xbf16, #tpu.memory_space<vmem>>, vector<1x16x256xbf16>
    %1 = vector.shape_cast %0 : vector<1x16x256xbf16> to vector<16x256xbf16>
    %c0_2 = arith.constant 0 : index
    %c0_3 = arith.constant 0 : index
    %c0_4 = arith.constant 0 : index
    %2 = vector.load %arg2[%c0_2, %c0_3, %c0_4] : memref<1x1x256xbf16, #tpu.memory_space<vmem>>, vector<1x1x256xbf16>
    %3 = vector.shape_cast %2 : vector<1x1x256xbf16> to vector<1x256xbf16>
    %4 = vector.shape_cast %3 : vector<1x256xbf16> to vector<1x256xbf16>
    %5 = vector.broadcast %4 : vector<1x256xbf16> to vector<16x256xbf16>
    %c0_5 = arith.constant 0 : index
    %c0_6 = arith.constant 0 : index
    %6 = vector.load %arg11[%c0_5, %c0_6] : memref<96x1xf32, #tpu.memory_space<vmem>>, vector<96x1xf32>
    %7 = vector.extract_strided_slice %6 {offsets = [0, 0], sizes = [32, 1], strides = [1, 1]} : vector<96x1xf32> to vector<32x1xf32>
    %8 = vector.shape_cast %7 : vector<32x1xf32> to vector<32x1xf32>
    %9 = vector.broadcast %8 : vector<32x1xf32> to vector<32x256xf32>
    %10 = vector.extract_strided_slice %6 {offsets = [32, 0], sizes = [16, 1], strides = [1, 1]} : vector<96x1xf32> to vector<16x1xf32>
    %11 = vector.shape_cast %10 : vector<16x1xf32> to vector<16x1xf32>
    %12 = vector.broadcast %11 : vector<16x1xf32> to vector<16x256xf32>
    %13 = vector.extract_strided_slice %6 {offsets = [48, 0], sizes = [32, 1], strides = [1, 1]} : vector<96x1xf32> to vector<32x1xf32>
    %14 = vector.shape_cast %13 : vector<32x1xf32> to vector<32x1xf32>
    %15 = vector.broadcast %14 : vector<32x1xf32> to vector<32x256xf32>
    %16 = vector.extract_strided_slice %6 {offsets = [80, 0], sizes = [16, 1], strides = [1, 1]} : vector<96x1xf32> to vector<16x1xf32>
    %17 = vector.shape_cast %16 : vector<16x1xf32> to vector<16x1xf32>
    %18 = vector.broadcast %17 : vector<16x1xf32> to vector<16x256xf32>
    %c0_7 = arith.constant 0 : index
    %c0_8 = arith.constant 0 : index
    %19 = vector.load %arg6[%c0_7, %c0_8] : memref<64x16xbf16, #tpu.memory_space<vmem>>, vector<64x16xbf16>
    %cst = arith.constant dense<0.000000e+00> : vector<64x256xf32>
    %20 = tpu.matmul %19, %1, %cst {dimension_numbers = #tpu.dot_dimension_numbers<[1], [0], [0], [1], [0, 0, 1, 1], [], []>} : vector<64x16xbf16>, vector<16x256xbf16>, vector<64x256xf32> -> vector<64x256xf32>
    %21 = vector.extract_strided_slice %20 {offsets = [0, 0], sizes = [32, 256], strides = [1, 1]} : vector<64x256xf32> to vector<32x256xf32>
    %22 = arith.addf %21, %9 : vector<32x256xf32>
    %23 = vector.extract_strided_slice %20 {offsets = [32, 0], sizes = [32, 256], strides = [1, 1]} : vector<64x256xf32> to vector<32x256xf32>
    %24 = arith.addf %23, %15 : vector<32x256xf32>
    %c0_9 = arith.constant 0 : index
    %c0_10 = arith.constant 0 : index
    %25 = vector.load %arg7[%c0_9, %c0_10] : memref<32x16xbf16, #tpu.memory_space<vmem>>, vector<32x16xbf16>
    %c0_11 = arith.constant 0 : index
    %c0_12 = arith.constant 0 : index
    %26 = vector.load %arg8[%c0_11, %c0_12] : memref<16x32xbf16, #tpu.memory_space<vmem>>, vector<16x32xbf16>
    %cst_13 = arith.constant 0.000000e+00 : f32
    %27 = vector.broadcast %cst_13 : f32 to vector<16x256xf32>
    %c0_14 = arith.constant 0 : index
    %c0_15 = arith.constant 0 : index
    %c0_16 = arith.constant 0 : index
    %28 = vector.load %arg4[%c0_14, %c0_15, %c0_16] : memref<1x16x256xbf16, #tpu.memory_space<vmem>>, vector<1x16x256xbf16>
    %29 = vector.shape_cast %28 : vector<1x16x256xbf16> to vector<16x256xbf16>
    %30 = arith.mulf %29, %5 : vector<16x256xbf16>
    %cst_17 = arith.constant dense<0.000000e+00> : vector<32x256xf32>
    %31 = tpu.matmul %25, %30, %cst_17 {dimension_numbers = #tpu.dot_dimension_numbers<[1], [0], [0], [1], [0, 0, 1, 1], [], []>} : vector<32x16xbf16>, vector<16x256xbf16>, vector<32x256xf32> -> vector<32x256xf32>
    %32 = arith.addf %22, %31 : vector<32x256xf32>
    %cst_18 = arith.constant 0.000000e+00 : f32
    %33 = vector.broadcast %cst_18 : f32 to vector<32x256xf32>
    %34 = arith.maximumf %32, %33 : vector<32x256xf32>
    %35 = arith.truncf %34 : vector<32x256xf32> to vector<32x256xbf16>
    %cst_19 = arith.constant dense<0.000000e+00> : vector<16x256xf32>
    %36 = tpu.matmul %26, %35, %cst_19 {dimension_numbers = #tpu.dot_dimension_numbers<[1], [0], [0], [1], [0, 0, 1, 1], [], []>} : vector<16x32xbf16>, vector<32x256xbf16>, vector<16x256xf32> -> vector<16x256xf32>
    %37 = arith.addf %36, %12 : vector<16x256xf32>
    %cst_20 = arith.constant 0.000000e+00 : f32
    %38 = vector.broadcast %cst_20 : f32 to vector<16x256xf32>
    %39 = arith.maximumf %37, %38 : vector<16x256xf32>
    %40 = arith.addf %27, %39 : vector<16x256xf32>
    %c0_21 = arith.constant 0 : index
    %c0_22 = arith.constant 0 : index
    %c0_23 = arith.constant 0 : index
    %41 = vector.load %arg5[%c0_21, %c0_22, %c0_23] : memref<1x16x256xbf16, #tpu.memory_space<vmem>>, vector<1x16x256xbf16>
    %42 = vector.shape_cast %41 : vector<1x16x256xbf16> to vector<16x256xbf16>
    %43 = arith.mulf %42, %5 : vector<16x256xbf16>
    %cst_24 = arith.constant dense<0.000000e+00> : vector<32x256xf32>
    %44 = tpu.matmul %25, %43, %cst_24 {dimension_numbers = #tpu.dot_dimension_numbers<[1], [0], [0], [1], [0, 0, 1, 1], [], []>} : vector<32x16xbf16>, vector<16x256xbf16>, vector<32x256xf32> -> vector<32x256xf32>
    %45 = arith.addf %22, %44 : vector<32x256xf32>
    %cst_25 = arith.constant 0.000000e+00 : f32
    %46 = vector.broadcast %cst_25 : f32 to vector<32x256xf32>
    %47 = arith.maximumf %45, %46 : vector<32x256xf32>
    %48 = arith.truncf %47 : vector<32x256xf32> to vector<32x256xbf16>
    %cst_26 = arith.constant dense<0.000000e+00> : vector<16x256xf32>
    %49 = tpu.matmul %26, %48, %cst_26 {dimension_numbers = #tpu.dot_dimension_numbers<[1], [0], [0], [1], [0, 0, 1, 1], [], []>} : vector<16x32xbf16>, vector<32x256xbf16>, vector<16x256xf32> -> vector<16x256xf32>
    %50 = arith.addf %49, %12 : vector<16x256xf32>
    %cst_27 = arith.constant 0.000000e+00 : f32
    %51 = vector.broadcast %cst_27 : f32 to vector<16x256xf32>
    %52 = arith.maximumf %50, %51 : vector<16x256xf32>
    %53 = arith.addf %40, %52 : vector<16x256xf32>
    %c0_28 = arith.constant 0 : index
    %c0_29 = arith.constant 0 : index
    %54 = vector.load %arg9[%c0_28, %c0_29] : memref<48x16xbf16, #tpu.memory_space<vmem>>, vector<48x16xbf16>
    %55 = arith.truncf %53 : vector<16x256xf32> to vector<16x256xbf16>
    %cst_30 = arith.constant dense<0.000000e+00> : vector<48x256xf32>
    %56 = tpu.matmul %54, %55, %cst_30 {dimension_numbers = #tpu.dot_dimension_numbers<[1], [0], [0], [1], [0, 0, 1, 1], [], []>} : vector<48x16xbf16>, vector<16x256xbf16>, vector<48x256xf32> -> vector<48x256xf32>
    %57 = vector.extract_strided_slice %56 {offsets = [0, 0], sizes = [32, 256], strides = [1, 1]} : vector<48x256xf32> to vector<32x256xf32>
    %58 = arith.addf %57, %24 : vector<32x256xf32>
    %59 = vector.extract_strided_slice %58 {offsets = [0, 0], sizes = [16, 256], strides = [1, 1]} : vector<32x256xf32> to vector<16x256xf32>
    %60 = arith.negf %59 : vector<16x256xf32>
    %61 = math.exp %60 : vector<16x256xf32>
    %cst_31 = arith.constant 1.000000e+00 : f32
    %62 = vector.broadcast %cst_31 : f32 to vector<16x256xf32>
    %63 = arith.addf %62, %61 : vector<16x256xf32>
    %64 = arith.divf %62, %63 : vector<16x256xf32>
    %65 = vector.extract_strided_slice %58 {offsets = [16, 0], sizes = [16, 256], strides = [1, 1]} : vector<32x256xf32> to vector<16x256xf32>
    %66 = arith.negf %65 : vector<16x256xf32>
    %67 = math.exp %66 : vector<16x256xf32>
    %cst_32 = arith.constant 1.000000e+00 : f32
    %68 = vector.broadcast %cst_32 : f32 to vector<16x256xf32>
    %69 = arith.addf %68, %67 : vector<16x256xf32>
    %70 = arith.divf %68, %69 : vector<16x256xf32>
    %71 = arith.extf %1 : vector<16x256xbf16> to vector<16x256xf32>
    %72 = arith.mulf %64, %71 : vector<16x256xf32>
    %73 = arith.truncf %72 : vector<16x256xf32> to vector<16x256xbf16>
    %74 = vector.extract_strided_slice %56 {offsets = [32, 0], sizes = [16, 256], strides = [1, 1]} : vector<48x256xf32> to vector<16x256xf32>
    %c0_33 = arith.constant 0 : index
    %c0_34 = arith.constant 0 : index
    %75 = vector.load %arg10[%c0_33, %c0_34] : memref<16x16xbf16, #tpu.memory_space<vmem>>, vector<16x16xbf16>
    %cst_35 = arith.constant dense<0.000000e+00> : vector<16x256xf32>
    %76 = tpu.matmul %75, %73, %cst_35 {dimension_numbers = #tpu.dot_dimension_numbers<[1], [0], [0], [1], [0, 0, 1, 1], [], []>} : vector<16x16xbf16>, vector<16x256xbf16>, vector<16x256xf32> -> vector<16x256xf32>
    %77 = arith.addf %74, %76 : vector<16x256xf32>
    %78 = arith.addf %77, %18 : vector<16x256xf32>
    %79 = math.tanh %78 : vector<16x256xf32>
    %80 = arith.subf %79, %71 : vector<16x256xf32>
    %81 = arith.mulf %70, %80 : vector<16x256xf32>
    %82 = arith.addf %71, %81 : vector<16x256xf32>
    %c0_36 = arith.constant 0 : index
    %c0_37 = arith.constant 0 : index
    %c0_38 = arith.constant 0 : index
    %83 = vector.load %arg12[%c0_36, %c0_37, %c0_38] : memref<1x16x256xf32, #tpu.memory_space<vmem>>, vector<1x16x256xf32>
    %84 = vector.shape_cast %83 : vector<1x16x256xf32> to vector<16x256xf32>
    %85 = vector.shape_cast %82 : vector<16x256xf32> to vector<1x16x256xf32>
    tpu.vector_store %arg12[%c0_36, %c0_37, %c0_38], %85 {strides = array<i32>} : memref<1x16x256xf32, #tpu.memory_space<vmem>>, vector<1x16x256xf32>,
    return
  }
  func.func @transform_0(%arg0: i32, %arg1: i32) -> (i32, i32, i32) {
    %c0_i32 = arith.constant 0 : i32
    %c0_i32_0 = arith.constant 0 : i32
    return %arg0, %c0_i32, %arg1 : i32, i32, i32
  }
  func.func @transform_1(%arg0: i32, %arg1: i32) -> (i32, i32, i32) {
    %c0_i32 = arith.constant 0 : i32
    %c0_i32_0 = arith.constant 0 : i32
    return %arg0, %c0_i32, %arg1 : i32, i32, i32
  }
  func.func @transform_2(%arg0: i32, %arg1: i32) -> (i32, i32, i32) {
    %c0_i32 = arith.constant 0 : i32
    %c0_i32_0 = arith.constant 0 : i32
    return %arg0, %c0_i32, %arg1 : i32, i32, i32
  }
  func.func @transform_3(%arg0: i32, %arg1: i32) -> (i32, i32, i32) {
    %c0_i32 = arith.constant 0 : i32
    %c0_i32_0 = arith.constant 0 : i32
    return %arg0, %c0_i32, %arg1 : i32, i32, i32
  }
  func.func @transform_4(%arg0: i32, %arg1: i32) -> (i32, i32) {
    %c0_i32 = arith.constant 0 : i32
    %c0_i32_0 = arith.constant 0 : i32
    %c0_i32_1 = arith.constant 0 : i32
    return %c0_i32, %c0_i32_0 : i32, i32
  }
  func.func @transform_5(%arg0: i32, %arg1: i32) -> (i32, i32) {
    %c0_i32 = arith.constant 0 : i32
    %c0_i32_0 = arith.constant 0 : i32
    %c0_i32_1 = arith.constant 0 : i32
    return %c0_i32, %c0_i32_0 : i32, i32
  }
  func.func @transform_6(%arg0: i32, %arg1: i32) -> (i32, i32) {
    %c0_i32 = arith.constant 0 : i32
    %c0_i32_0 = arith.constant 0 : i32
    %c0_i32_1 = arith.constant 0 : i32
    return %c0_i32, %c0_i32_0 : i32, i32
  }
  func.func @transform_7(%arg0: i32, %arg1: i32) -> (i32, i32) {
    %c0_i32 = arith.constant 0 : i32
    %c0_i32_0 = arith.constant 0 : i32
    %c0_i32_1 = arith.constant 0 : i32
    return %c0_i32, %c0_i32_0 : i32, i32
  }
  func.func @transform_8(%arg0: i32, %arg1: i32) -> (i32, i32) {
    %c0_i32 = arith.constant 0 : i32
    %c0_i32_0 = arith.constant 0 : i32
    %c0_i32_1 = arith.constant 0 : i32
    return %c0_i32, %c0_i32_0 : i32, i32
  }
  func.func @transform_9(%arg0: i32, %arg1: i32) -> (i32, i32) {
    %c0_i32 = arith.constant 0 : i32
    %c0_i32_0 = arith.constant 0 : i32
    %c0_i32_1 = arith.constant 0 : i32
    return %c0_i32, %c0_i32_0 : i32, i32
  }
  func.func @transform_10(%arg0: i32, %arg1: i32) -> (i32, i32, i32) {
    %c0_i32 = arith.constant 0 : i32
    %c0_i32_0 = arith.constant 0 : i32
    return %arg0, %c0_i32, %arg1 : i32, i32, i32
  }
}

</mosaic_0001>

<llo_original>
// kernel: tpu_custom_call.1
$region0: #{tpu_custom_call.1}
  #allocation0 [shape = 'u32[]', space=smem, size = 0x4, offset = 0x4, fixed_abs, tag = 'smem constant byte address 0x4 - core index']
  #allocation1 [shape = 'u32[144,128]{1,0:T(1,128)}', space=vmem, size = 0x12000, scoped, tag = 'internal scratch']
  %s0 = inlined_call_operand.vmem [shape: bf16[2,1,256], index: 0, kind: input, shape index: {}]
  %s1 = inlined_call_operand.vmem [shape: bf16[2,16,256], index: 1, kind: input, shape index: {}]
  %s2 = inlined_call_operand.vmem [shape: bf16[2,16,256], index: 2, kind: input, shape index: {}]
  %s3 = inlined_call_operand.vmem [shape: bf16[2,16,256], index: 3, kind: input, shape index: {}]
  %s4 = inlined_call_operand.vmem [shape: bf16[64,16], index: 4, kind: input, shape index: {}]
  %s5 = inlined_call_operand.vmem [shape: bf16[32,16], index: 5, kind: input, shape index: {}]
  %s6 = inlined_call_operand.vmem [shape: bf16[16,32], index: 6, kind: input, shape index: {}]
  %s7 = inlined_call_operand.vmem [shape: bf16[48,16], index: 7, kind: input, shape index: {}]
  %s8 = inlined_call_operand.vmem [shape: bf16[16,16], index: 8, kind: input, shape index: {}]
  %s9 = inlined_call_operand.vmem [shape: f32[96,1], index: 9, kind: input, shape index: {}]
  %s10 = inlined_call_operand.hbm [shape: f32[2,16,256], index: 10, kind: output, shape index: {}]
  %s11 = sld [smem:[#allocation0]]
  $region73: #{tpu_custom_call.1} parent=0
    _
  %s13 = ssub.s32 1, %s11
  %s14 = scalar_select 0, %s13, %s11
  $region1: #{tpu_custom_call.1} parent=0
    #allocation2 [shape = 'u8[32768]{0}', space=vmem, size = 0x8000, scoped, tag = 'output window, operand 0']
    #allocation3 [shape = 's32[2]{0}', space=sflag, size = 0x8, scoped, tag = 'scoped memory for tpu_custom_call.1']
    %15 = vsyncpa [#allocation3], 0
    %s16 = scalar_lea.sflag [#allocation3], 1
    %17 = vsyncpa %s16, 0
    loop: start=0, step=1, limit=4
    $region2: #{tpu_custom_call.1} parent=1 // loop_pre_header
      _
    $region3: #{tpu_custom_call.1} parent=1 // loop_header
      %s19 = sphi 0, %s23
      %p20 = scmp.ge.s32.totalorder %s19, 4
      %s26 = sphi 0, %s38
      %s27 = sphi 0, %s34
      %s28 = sphi 0, %s26
      %s29 = sphi 0, %s27
      %s30 = sphi 0, %s28
      %s31 = sphi 0, %s29
      %s43 = sphi 0, %s45
      %s46 = sphi 0, %s43
      %s47 = sphi 0, %s46
      %s63 = sphi 0, %s47
      %s71 = sphi 0, %s73
      %s74 = sphi 0, %s71
      %s75 = sphi 0, %s74
      %s91 = sphi 0, %s75
      %s99 = sphi 0, %s101
      %s102 = sphi 0, %s99
      %s103 = sphi 0, %s102
      %s119 = sphi 0, %s103
      %s127 = sphi 0, %s129
      %s130 = sphi 0, %s127
      %s131 = sphi 0, %s130
      %s147 = sphi 0, %s131
      %s151 = sphi 0, %s151
      %s153 = sphi 0, %s151
      %s154 = sphi 0, %s153
      %s168 = sphi 0, %s154
      %s172 = sphi 0, %s172
      %s174 = sphi 0, %s172
      %s175 = sphi 0, %s174
      %s189 = sphi 0, %s175
      %s193 = sphi 0, %s193
      %s195 = sphi 0, %s193
      %s196 = sphi 0, %s195
      %s210 = sphi 0, %s196
      %s214 = sphi 0, %s214
      %s216 = sphi 0, %s214
      %s217 = sphi 0, %s216
      %s231 = sphi 0, %s217
      %s235 = sphi 0, %s235
      %s237 = sphi 0, %s235
      %s238 = sphi 0, %s237
      %s252 = sphi 0, %s238
      %s256 = sphi 0, %s256
      %s258 = sphi 0, %s256
      %s259 = sphi 0, %s258
      %s273 = sphi 0, %s259
      %s281 = sphi 0, %s283
      %s284 = sphi 0, %s281
      %s285 = sphi 0, %s284
      %s301 = sphi 0, %s285
    $region4: #{tpu_custom_call.1} parent=1 // loop_header_branch
      %22 = sbr.rel (%p20) target = $region8
    $region5: #{tpu_custom_call.1} parent=1 // loop_body
      %s24 = ssub.s32 %s19, 1
      %s25 = ssub.s32 %s19, 2
      %s32 = sadd.s32 1, %s27
      %p33 = scmp.ge.s32.totalorder %s32, 1
      %s34 = scalar_select %p33, 0, %s32
      %s35 = sadd.s32 1, %s26
      %s36 = scalar_select %p33, %s35, %s26
      %p37 = scmp.ge.s32.totalorder %s36, 2
      %s38 = scalar_select %p37, 0, %s36
      %s39 = ssub.s32 %s26, %s38
      %s40 = ssub.s32 %s27, %s34
      %s41 = sor.u32 %s39, %s40
      %p42 = scmp.eq.s32.totalorder %s41, 0
      %s44 = sadd.s32 %s43, 1
      %s45 = scalar_select %p42, %s43, %s44
      %p48 = pneg %p42
      %p49 = scmp.eq.s32.totalorder %s19, 1
      %p50 = por %p48, %p49
      %p51 = scmp.ne.s32.totalorder %s43, %s46
      %p52 = scmp.eq.s32.totalorder %s19, 0
      %p53 = por %p51, %p52
      %p54 = scmp.ne.s32.totalorder %s43, %s46
      %p55 = scmp.eq.s32.totalorder %s24, 1
      %p56 = por %p54, %p55
      %p57 = scmp.ne.s32.totalorder %s46, %s47
      %p58 = scmp.eq.s32.totalorder %s24, 0
      %p59 = por %p57, %p58
      %p60 = scmp.ne.s32.totalorder %s46, %s47
      %p61 = scmp.eq.s32.totalorder %s25, 1
      %p62 = por %p60, %p61
      %p64 = scmp.ne.s32.totalorder %s47, %s63
      %p65 = scmp.eq.s32.totalorder %s25, 0
      %p66 = por %p64, %p65
      %s67 = ssub.s32 %s26, %s38
      %s68 = ssub.s32 %s27, %s34
      %s69 = sor.u32 %s67, %s68
      %p70 = scmp.eq.s32.totalorder %s69, 0
      %s72 = sadd.s32 %s71, 1
      %s73 = scalar_select %p70, %s71, %s72
      %p76 = pneg %p70
      %p77 = scmp.eq.s32.totalorder %s19, 1
      %p78 = por %p76, %p77
      %p79 = scmp.ne.s32.totalorder %s71, %s74
      %p80 = scmp.eq.s32.totalorder %s19, 0
      %p81 = por %p79, %p80
      %p82 = scmp.ne.s32.totalorder %s71, %s74
      %p83 = scmp.eq.s32.totalorder %s24, 1
      %p84 = por %p82, %p83
      %p85 = scmp.ne.s32.totalorder %s74, %s75
      %p86 = scmp.eq.s32.totalorder %s24, 0
      %p87 = por %p85, %p86
      %p88 = scmp.ne.s32.totalorder %s74, %s75
      %p89 = scmp.eq.s32.totalorder %s25, 1
      %p90 = por %p88, %p89
      %p92 = scmp.ne.s32.totalorder %s75, %s91
      %p93 = scmp.eq.s32.totalorder %s25, 0
      %p94 = por %p92, %p93
      %s95 = ssub.s32 %s26, %s38
      %s96 = ssub.s32 %s27, %s34
      %s97 = sor.u32 %s95, %s96
      %p98 = scmp.eq.s32.totalorder %s97, 0
      %s100 = sadd.s32 %s99, 1
      %s101 = scalar_select %p98, %s99, %s100
      %p104 = pneg %p98
      %p105 = scmp.eq.s32.totalorder %s19, 1
      %p106 = por %p104, %p105
      %p107 = scmp.ne.s32.totalorder %s99, %s102
      %p108 = scmp.eq.s32.totalorder %s19, 0
      %p109 = por %p107, %p108
      %p110 = scmp.ne.s32.totalorder %s99, %s102
      %p111 = scmp.eq.s32.totalorder %s24, 1
      %p112 = por %p110, %p111
      %p113 = scmp.ne.s32.totalorder %s102, %s103
      %p114 = scmp.eq.s32.totalorder %s24, 0
      %p115 = por %p113, %p114
      %p116 = scmp.ne.s32.totalorder %s102, %s103
      %p117 = scmp.eq.s32.totalorder %s25, 1
      %p118 = por %p116, %p117
      %p120 = scmp.ne.s32.totalorder %s103, %s119
      %p121 = scmp.eq.s32.totalorder %s25, 0
      %p122 = por %p120, %p121
      %s123 = ssub.s32 %s26, %s38
      %s124 = ssub.s32 %s27, %s34
      %s125 = sor.u32 %s123, %s124
      %p126 = scmp.eq.s32.totalorder %s125, 0
      %s128 = sadd.s32 %s127, 1
      %s129 = scalar_select %p126, %s127, %s128
      %p132 = pneg %p126
      %p133 = scmp.eq.s32.totalorder %s19, 1
      %p134 = por %p132, %p133
      %p135 = scmp.ne.s32.totalorder %s127, %s130
      %p136 = scmp.eq.s32.totalorder %s19, 0
      %p137 = por %p135, %p136
      %p138 = scmp.ne.s32.totalorder %s127, %s130
      %p139 = scmp.eq.s32.totalorder %s24, 1
      %p140 = por %p138, %p139
      %p141 = scmp.ne.s32.totalorder %s130, %s131
      %p142 = scmp.eq.s32.totalorder %s24, 0
      %p143 = por %p141, %p142
      %p144 = scmp.ne.s32.totalorder %s130, %s131
      %p145 = scmp.eq.s32.totalorder %s25, 1
      %p146 = por %p144, %p145
      %p148 = scmp.ne.s32.totalorder %s131, %s147
      %p149 = scmp.eq.s32.totalorder %s25, 0
      %p150 = por %p148, %p149
      %s152 = sadd.s32 %s151, 1
      %p155 = scmp.eq.s32.totalorder %s19, 1
      %p156 = scmp.ne.s32.totalorder %s151, %s153
      %p157 = scmp.eq.s32.totalorder %s19, 0
      %p158 = por %p156, %p157
      %p159 = scmp.ne.s32.totalorder %s151, %s153
      %p160 = scmp.eq.s32.totalorder %s24, 1
      %p161 = por %p159, %p160
      %p162 = scmp.ne.s32.totalorder %s153, %s154
      %p163 = scmp.eq.s32.totalorder %s24, 0
      %p164 = por %p162, %p163
      %p165 = scmp.ne.s32.totalorder %s153, %s154
      %p166 = scmp.eq.s32.totalorder %s25, 1
      %p167 = por %p165, %p166
      %p169 = scmp.ne.s32.totalorder %s154, %s168
      %p170 = scmp.eq.s32.totalorder %s25, 0
      %p171 = por %p169, %p170
      %s173 = sadd.s32 %s172, 1
      %p176 = scmp.eq.s32.totalorder %s19, 1
      %p177 = scmp.ne.s32.totalorder %s172, %s174
      %p178 = scmp.eq.s32.totalorder %s19, 0
      %p179 = por %p177, %p178
      %p180 = scmp.ne.s32.totalorder %s172, %s174
      %p181 = scmp.eq.s32.totalorder %s24, 1
      %p182 = por %p180, %p181
      %p183 = scmp.ne.s32.totalorder %s174, %s175
      %p184 = scmp.eq.s32.totalorder %s24, 0
      %p185 = por %p183, %p184
      %p186 = scmp.ne.s32.totalorder %s174, %s175
      %p187 = scmp.eq.s32.totalorder %s25, 1
      %p188 = por %p186, %p187
      %p190 = scmp.ne.s32.totalorder %s175, %s189
      %p191 = scmp.eq.s32.totalorder %s25, 0
      %p192 = por %p190, %p191
      %s194 = sadd.s32 %s193, 1
      %p197 = scmp.eq.s32.totalorder %s19, 1
      %p198 = scmp.ne.s32.totalorder %s193, %s195
      %p199 = scmp.eq.s32.totalorder %s19, 0
      %p200 = por %p198, %p199
      %p201 = scmp.ne.s32.totalorder %s193, %s195
      %p202 = scmp.eq.s32.totalorder %s24, 1
      %p203 = por %p201, %p202
      %p204 = scmp.ne.s32.totalorder %s195, %s196
      %p205 = scmp.eq.s32.totalorder %s24, 0
      %p206 = por %p204, %p205
      %p207 = scmp.ne.s32.totalorder %s195, %s196
      %p208 = scmp.eq.s32.totalorder %s25, 1
      %p209 = por %p207, %p208
      %p211 = scmp.ne.s32.totalorder %s196, %s210
      %p212 = scmp.eq.s32.totalorder %s25, 0
      %p213 = por %p211, %p212
      %s215 = sadd.s32 %s214, 1
      %p218 = scmp.eq.s32.totalorder %s19, 1
      %p219 = scmp.ne.s32.totalorder %s214, %s216
      %p220 = scmp.eq.s32.totalorder %s19, 0
      %p221 = por %p219, %p220
      %p222 = scmp.ne.s32.totalorder %s214, %s216
      %p223 = scmp.eq.s32.totalorder %s24, 1
      %p224 = por %p222, %p223
      %p225 = scmp.ne.s32.totalorder %s216, %s217
      %p226 = scmp.eq.s32.totalorder %s24, 0
      %p227 = por %p225, %p226
      %p228 = scmp.ne.s32.totalorder %s216, %s217
      %p229 = scmp.eq.s32.totalorder %s25, 1
      %p230 = por %p228, %p229
      %p232 = scmp.ne.s32.totalorder %s217, %s231
      %p233 = scmp.eq.s32.totalorder %s25, 0
      %p234 = por %p232, %p233
      %s236 = sadd.s32 %s235, 1
      %p239 = scmp.eq.s32.totalorder %s19, 1
      %p240 = scmp.ne.s32.totalorder %s235, %s237
      %p241 = scmp.eq.s32.totalorder %s19, 0
      %p242 = por %p240, %p241
      %p243 = scmp.ne.s32.totalorder %s235, %s237
      %p244 = scmp.eq.s32.totalorder %s24, 1
      %p245 = por %p243, %p244
      %p246 = scmp.ne.s32.totalorder %s237, %s238
      %p247 = scmp.eq.s32.totalorder %s24, 0
      %p248 = por %p246, %p247
      %p249 = scmp.ne.s32.totalorder %s237, %s238
      %p250 = scmp.eq.s32.totalorder %s25, 1
      %p251 = por %p249, %p250
      %p253 = scmp.ne.s32.totalorder %s238, %s252
      %p254 = scmp.eq.s32.totalorder %s25, 0
      %p255 = por %p253, %p254
      %s257 = sadd.s32 %s256, 1
      %p260 = scmp.eq.s32.totalorder %s19, 1
      %p261 = scmp.ne.s32.totalorder %s256, %s258
      %p262 = scmp.eq.s32.totalorder %s19, 0
      %p263 = por %p261, %p262
      %p264 = scmp.ne.s32.totalorder %s256, %s258
      %p265 = scmp.eq.s32.totalorder %s24, 1
      %p266 = por %p264, %p265
      %p267 = scmp.ne.s32.totalorder %s258, %s259
      %p268 = scmp.eq.s32.totalorder %s24, 0
      %p269 = por %p267, %p268
      %p270 = scmp.ne.s32.totalorder %s258, %s259
      %p271 = scmp.eq.s32.totalorder %s25, 1
      %p272 = por %p270, %p271
      %p274 = scmp.ne.s32.totalorder %s259, %s273
      %p275 = scmp.eq.s32.totalorder %s25, 0
      %p276 = por %p274, %p275
      %s277 = ssub.s32 %s26, %s38
      %s278 = ssub.s32 %s27, %s34
      %s279 = sor.u32 %s277, %s278
      %p280 = scmp.eq.s32.totalorder %s279, 0
      %s282 = sadd.s32 %s281, 1
      %s283 = scalar_select %p280, %s281, %s282
      %p286 = pneg %p280
      %p287 = scmp.eq.s32.totalorder %s19, 1
      %p288 = por %p286, %p287
      %p289 = scmp.ne.s32.totalorder %s281, %s284
      %p290 = scmp.eq.s32.totalorder %s19, 0
      %p291 = por %p289, %p290
      %p292 = scmp.ne.s32.totalorder %s281, %s284
      %p293 = scmp.eq.s32.totalorder %s24, 1
      %p294 = por %p292, %p293
      %p295 = scmp.ne.s32.totalorder %s284, %s285
      %p296 = scmp.eq.s32.totalorder %s24, 0
      %p297 = por %p295, %p296
      %p298 = scmp.ne.s32.totalorder %s284, %s285
      %p299 = scmp.eq.s32.totalorder %s25, 1
      %p300 = por %p298, %p299
      %p302 = scmp.ne.s32.totalorder %s285, %s301
      %p303 = scmp.eq.s32.totalorder %s25, 0
      %p304 = por %p302, %p303
      %p305 = scmp.le.s32.totalorder 1, %s19
      %p306 = scmp.lt.s32.totalorder %s19, 3
      %p307 = pnand %p305, %p306
      %p308 = pneg %p307
      // Predicated region
      $region9: #{tpu_custom_call.1} parent=5 // pred_check
        _
      $region10: #{tpu_custom_call.1} parent=5 // pred_check_branch
        %310 = sbr.rel (%p307) target = $region12
      $region11: #{tpu_custom_call.1} parent=5 // pred_region
        %s311 = ssub.s32 %s19, 1
        // Predicated region
        $region13: #{tpu_custom_call.1} parent=11 // pred_check
          %p312 = pneg %p164
        $region14: #{tpu_custom_call.1} parent=11 // pred_check_branch
          %314 = sbr.rel (%p312) target = $region16
        $region15: #{tpu_custom_call.1} parent=11 // pred_region
          _
        $region16: #{tpu_custom_call.1} parent=11 // pred_fallthru
          _
        // Predicated region
        $region17: #{tpu_custom_call.1} parent=11 // pred_check
          %p315 = pneg %p185
        $region18: #{tpu_custom_call.1} parent=11 // pred_check_branch
          %317 = sbr.rel (%p315) target = $region20
        $region19: #{tpu_custom_call.1} parent=11 // pred_region
          _
        $region20: #{tpu_custom_call.1} parent=11 // pred_fallthru
          _
        // Predicated region
        $region21: #{tpu_custom_call.1} parent=11 // pred_check
          %p318 = pneg %p206
        $region22: #{tpu_custom_call.1} parent=11 // pred_check_branch
          %320 = sbr.rel (%p318) target = $region24
        $region23: #{tpu_custom_call.1} parent=11 // pred_region
          _
        $region24: #{tpu_custom_call.1} parent=11 // pred_fallthru
          _
        // Predicated region
        $region25: #{tpu_custom_call.1} parent=11 // pred_check
          %p321 = pneg %p227
        $region26: #{tpu_custom_call.1} parent=11 // pred_check_branch
          %323 = sbr.rel (%p321) target = $region28
        $region27: #{tpu_custom_call.1} parent=11 // pred_region
          _
        $region28: #{tpu_custom_call.1} parent=11 // pred_fallthru
          _
        // Predicated region
        $region29: #{tpu_custom_call.1} parent=11 // pred_check
          %p324 = pneg %p248
        $region30: #{tpu_custom_call.1} parent=11 // pred_check_branch
          %326 = sbr.rel (%p324) target = $region32
        $region31: #{tpu_custom_call.1} parent=11 // pred_region
          _
        $region32: #{tpu_custom_call.1} parent=11 // pred_fallthru
          _
        // Predicated region
        $region33: #{tpu_custom_call.1} parent=11 // pred_check
          %p327 = pneg %p269
        $region34: #{tpu_custom_call.1} parent=11 // pred_check_branch
          %329 = sbr.rel (%p327) target = $region36
        $region35: #{tpu_custom_call.1} parent=11 // pred_region
          _
        $region36: #{tpu_custom_call.1} parent=11 // pred_fallthru
          _
      $region12: #{tpu_custom_call.1} parent=5 // pred_fallthru
        _
      %p330 = scmp.lt.s32.totalorder %s19, 2
      // Predicated region
      $region37: #{tpu_custom_call.1} parent=5 // pred_check
        %p331 = pneg %p330
      $region38: #{tpu_custom_call.1} parent=5 // pred_check_branch
        %333 = sbr.rel (%p331) target = $region40
      $region39: #{tpu_custom_call.1} parent=5 // pred_region
        // Predicated region
        $region41: #{tpu_custom_call.1} parent=39 // pred_check
          %p334 = pneg %p53
        $region42: #{tpu_custom_call.1} parent=39 // pred_check_branch
          %336 = sbr.rel (%p334) target = $region44
        $region43: #{tpu_custom_call.1} parent=39 // pred_region
          %s337 = smul.u32 2, %s27
          %p338 = scmp.lt.s32.totalorder %s26, 1
          %s339 = scalar_select %p338, %s26, 1
          %p340 = scmp.lt.s32.totalorder %s337, 1
          %s341 = scalar_select %p340, %s337, 1
          %s342 = smul.addr %s339, 2
          %s343 = sadd.s32 %s341, %s342
          %s344 = scalar_lea.vmem %s0, %s343
          %s345 = smul.u32 2, %s27
        $region44: #{tpu_custom_call.1} parent=39 // pred_fallthru
          _
        // Predicated region
        $region45: #{tpu_custom_call.1} parent=39 // pred_check
          %p346 = pneg %p81
        $region46: #{tpu_custom_call.1} parent=39 // pred_check_branch
          %348 = sbr.rel (%p346) target = $region48
        $region47: #{tpu_custom_call.1} parent=39 // pred_region
          %s349 = smul.u32 2, %s27
          %p350 = scmp.lt.s32.totalorder %s26, 1
          %s351 = scalar_select %p350, %s26, 1
          %p352 = scmp.lt.s32.totalorder %s349, 1
          %s353 = scalar_select %p352, %s349, 1
          %s354 = smul.addr %s351, 4
          %s355 = sadd.s32 %s353, %s354
          %s356 = smul.addr %s355, 4
          %s357 = scalar_lea.vmem %s1, %s356
          %s358 = smul.u32 2, %s27
        $region48: #{tpu_custom_call.1} parent=39 // pred_fallthru
          _
        // Predicated region
        $region49: #{tpu_custom_call.1} parent=39 // pred_check
          %p359 = pneg %p109
        $region50: #{tpu_custom_call.1} parent=39 // pred_check_branch
          %361 = sbr.rel (%p359) target = $region52
        $region51: #{tpu_custom_call.1} parent=39 // pred_region
          %s362 = smul.u32 2, %s27
          %p363 = scmp.lt.s32.totalorder %s26, 1
          %s364 = scalar_select %p363, %s26, 1
          %p365 = scmp.lt.s32.totalorder %s362, 1
          %s366 = scalar_select %p365, %s362, 1
          %s367 = smul.addr %s364, 4
          %s368 = sadd.s32 %s366, %s367
          %s369 = smul.addr %s368, 4
          %s370 = scalar_lea.vmem %s2, %s369
          %s371 = smul.u32 2, %s27
        $region52: #{tpu_custom_call.1} parent=39 // pred_fallthru
          _
        // Predicated region
        $region53: #{tpu_custom_call.1} parent=39 // pred_check
          %p372 = pneg %p137
        $region54: #{tpu_custom_call.1} parent=39 // pred_check_branch
          %374 = sbr.rel (%p372) target = $region56
        $region55: #{tpu_custom_call.1} parent=39 // pred_region
          %s375 = smul.u32 2, %s27
          %p376 = scmp.lt.s32.totalorder %s26, 1
          %s377 = scalar_select %p376, %s26, 1
          %p378 = scmp.lt.s32.totalorder %s375, 1
          %s379 = scalar_select %p378, %s375, 1
          %s380 = smul.addr %s377, 4
          %s381 = sadd.s32 %s379, %s380
          %s382 = smul.addr %s381, 4
          %s383 = scalar_lea.vmem %s3, %s382
          %s384 = smul.u32 2, %s27
        $region56: #{tpu_custom_call.1} parent=39 // pred_fallthru
          _
      $region40: #{tpu_custom_call.1} parent=5 // pred_fallthru
        _
      %p385 = scmp.le.s32.totalorder 1, %s19
      %p386 = scmp.lt.s32.totalorder %s19, 3
      %p387 = pnand %p385, %p386
      %p388 = pneg %p387
      // Predicated region
      $region57: #{tpu_custom_call.1} parent=5 // pred_check
        _
      $region58: #{tpu_custom_call.1} parent=5 // pred_check_branch
        %390 = sbr.rel (%p387) target = $region60
      $region59: #{tpu_custom_call.1} parent=5 // pred_region
        %s391 = ssub.s32 %s19, 1
        %s392 = smul.u32 2, %s29
        %p393 = scmp.lt.s32.totalorder %s28, 1
        %s394 = scalar_select %p393, %s28, 1
        %p395 = scmp.lt.s32.totalorder %s392, 1
        %s396 = scalar_select %p395, %s392, 1
        %s397 = smul.addr %s394, 2
        %s398 = sadd.s32 %s396, %s397
        %s399 = scalar_lea.vmem %s0, %s398
        %p400 = pneg %p59
        %p401 = pneg %p56
        %s402 = smul.u32 2, %s29
        %p403 = scmp.lt.s32.totalorder %s28, 1
        %s404 = scalar_select %p403, %s28, 1
        %p405 = scmp.lt.s32.totalorder %s402, 1
        %s406 = scalar_select %p405, %s402, 1
        %s407 = smul.addr %s404, 4
        %s408 = sadd.s32 %s406, %s407
        %s409 = smul.addr %s408, 4
        %s410 = scalar_lea.vmem %s1, %s409
        %p411 = pneg %p87
        %p412 = pneg %p84
        %s413 = smul.u32 2, %s29
        %p414 = scmp.lt.s32.totalorder %s28, 1
        %s415 = scalar_select %p414, %s28, 1
        %p416 = scmp.lt.s32.totalorder %s413, 1
        %s417 = scalar_select %p416, %s413, 1
        %s418 = smul.addr %s415, 4
        %s419 = sadd.s32 %s417, %s418
        %s420 = smul.addr %s419, 4
        %s421 = scalar_lea.vmem %s2, %s420
        %p422 = pneg %p115
        %p423 = pneg %p112
        %s424 = smul.u32 2, %s29
        %p425 = scmp.lt.s32.totalorder %s28, 1
        %s426 = scalar_select %p425, %s28, 1
        %p427 = scmp.lt.s32.totalorder %s424, 1
        %s428 = scalar_select %p427, %s424, 1
        %s429 = smul.addr %s426, 4
        %s430 = sadd.s32 %s428, %s429
        %s431 = smul.addr %s430, 4
        %s432 = scalar_lea.vmem %s3, %s431
        %p433 = pneg %p143
        %p434 = pneg %p140
        %p435 = pneg %p164
        %p436 = pneg %p161
        %p437 = pneg %p185
        %p438 = pneg %p182
        %p439 = pneg %p206
        %p440 = pneg %p203
        %p441 = pneg %p227
        %p442 = pneg %p224
        %p443 = pneg %p248
        %p444 = pneg %p245
        %p445 = pneg %p269
        %p446 = pneg %p266
        %p447 = pneg %p297
        %p448 = pneg %p294
        %s449 = sand.u32 %s284, 1
        %s450 = scalar_lea.sflag [#allocation3], %s449
        %s451 = sand.u32 %s284, 1
        %s452 = smul.addr %s451, 32
        %s453 = scalar_lea.vmem [#allocation2], %s452
        %s454 = smul.u32 2, %s29
        %p455 = scmp.lt.s32.totalorder %s28, 1
        %s456 = scalar_select %p455, %s28, 1
        %p457 = scmp.lt.s32.totalorder %s454, 1
        %s458 = scalar_select %p457, %s454, 1
        %s459 = smul.addr %s456, 2
        %s460 = sadd.s32 %s458, %s459
        %s461 = scalar_lea.vmem %s0, %s460
        %s462 = smul.u32 2, %s29
        %s463 = smul.u32 2, %s29
        %p464 = scmp.lt.s32.totalorder %s28, 1
        %s465 = scalar_select %p464, %s28, 1
        %p466 = scmp.lt.s32.totalorder %s463, 1
        %s467 = scalar_select %p466, %s463, 1
        %s468 = smul.addr %s465, 4
        %s469 = sadd.s32 %s467, %s468
        %s470 = smul.addr %s469, 4
        %s471 = scalar_lea.vmem %s1, %s470
        %s472 = smul.u32 2, %s29
        %s473 = smul.u32 2, %s29
        %p474 = scmp.lt.s32.totalorder %s28, 1
        %s475 = scalar_select %p474, %s28, 1
        %p476 = scmp.lt.s32.totalorder %s473, 1
        %s477 = scalar_select %p476, %s473, 1
        %s478 = smul.addr %s475, 4
        %s479 = sadd.s32 %s477, %s478
        %s480 = smul.addr %s479, 4
        %s481 = scalar_lea.vmem %s2, %s480
        %s482 = smul.u32 2, %s29
        %s483 = smul.u32 2, %s29
        %p484 = scmp.lt.s32.totalorder %s28, 1
        %s485 = scalar_select %p484, %s28, 1
        %p486 = scmp.lt.s32.totalorder %s483, 1
        %s487 = scalar_select %p486, %s483, 1
        %s488 = smul.addr %s485, 4
        %s489 = sadd.s32 %s487, %s488
        %s490 = smul.addr %s489, 4
        %s491 = scalar_lea.vmem %s3, %s490
        %s492 = smul.u32 2, %s29
        %s493 = smul.u32 2, %s29
        %v495 = vld [vmem:[%s471] sm:$0xff]
        %v496 = vld [vmem:[%s471 + $0x8] sm:$0xff]
        %v497 = vld [vmem:[%s461] sm:$0x3]
        %v500 = vunpack.c.l.s4 1966171168
        %v501 = vunpack.c.0.s8 %v500
        %v502 = vlaneseq
        %v503 = vshrl.u32 %v502, 7
        %v504 = vsub.s32 %v501, %v503
        %v505 = vrot.slane %v497, %v504
        %v506 = vcombine.high %v505, %v505
        %v508 = vunpack.c.l.s4 1966171168
        %v509 = vunpack.c.0.s8 %v508
        %v510 = vlaneseq
        %v511 = vshrl.u32 %v510, 7
        %v512 = vsub.s32 %v509, %v511
        %v513 = vrot.slane %v505, %v512
        %v515 = vunpack.c.l.s4 1966171168
        %v516 = vunpack.c.0.s8 %v515
        %v517 = vlaneseq
        %v518 = vshrl.u32 %v517, 7
        %v519 = vsub.s32 %v516, %v518
        %v520 = vrot.slane %v506, %v519
        %v522 = vpack.i.b16 %v513, %v513
        %v524 = vlaneseq
        %v525 = vshrl.u32 %v524, 7
        %v526 = vsub.s32 0, %v525
        %v527 = vrot.slane %v522, %v526
        %v529 = vpack.i.b16 %v520, %v520
        %v531 = vlaneseq
        %v532 = vshrl.u32 %v531, 7
        %v533 = vsub.s32 0, %v532
        %v534 = vrot.slane %v529, %v533
        %v535 = vld [vmem:[%s9] sm:$0xff]
        %v536 = vld [vmem:[%s9 + $0x8] sm:$0xff]
        %v537 = vld [vmem:[%s9 + $0x10] sm:$0xff]
        %v538 = vld [vmem:[%s9 + $0x18] sm:$0xff]
        %v539 = vld [vmem:[%s9 + $0x20] sm:$0xff]
        %v540 = vld [vmem:[%s9 + $0x28] sm:$0xff]
        %v541 = vld [vmem:[%s9 + $0x30] sm:$0xff]
        %v542 = vld [vmem:[%s9 + $0x38] sm:$0xff]
        %v543 = vld [vmem:[%s9 + $0x40] sm:$0xff]
        %v544 = vld [vmem:[%s9 + $0x48] sm:$0xff]
        %v545 = vld [vmem:[%s9 + $0x50] sm:$0xff]
        %v546 = vld [vmem:[%s9 + $0x58] sm:$0xff]
        %548 = vset.pattern.permute.xlu0 0
        %549 = vperm.xlu0 %548, %v535
        %v550 = vpop.permute.xlu0 %549
        %553 = vset.pattern.permute.xlu0 0
        %554 = vperm.xlu0 %553, %v536
        %v555 = vpop.permute.xlu0 %554
        %558 = vset.pattern.permute.xlu0 0
        %559 = vperm.xlu0 %558, %v537
        %v560 = vpop.permute.xlu0 %559
        %563 = vset.pattern.permute.xlu0 0
        %564 = vperm.xlu0 %563, %v538
        %v565 = vpop.permute.xlu0 %564
        %568 = vset.pattern.permute.xlu0 0
        %569 = vperm.xlu0 %568, %v539
        %v570 = vpop.permute.xlu0 %569
        %573 = vset.pattern.permute.xlu0 0
        %574 = vperm.xlu0 %573, %v540
        %v575 = vpop.permute.xlu0 %574
        %578 = vset.pattern.permute.xlu0 0
        %579 = vperm.xlu0 %578, %v541
        %v580 = vpop.permute.xlu0 %579
        %583 = vset.pattern.permute.xlu0 0
        %584 = vperm.xlu0 %583, %v542
        %v585 = vpop.permute.xlu0 %584
        %588 = vset.pattern.permute.xlu0 0
        %589 = vperm.xlu0 %588, %v543
        %v590 = vpop.permute.xlu0 %589
        %593 = vset.pattern.permute.xlu0 0
        %594 = vperm.xlu0 %593, %v544
        %v595 = vpop.permute.xlu0 %594
        %598 = vset.pattern.permute.xlu0 0
        %599 = vperm.xlu0 %598, %v545
        %v600 = vpop.permute.xlu0 %599
        %603 = vset.pattern.permute.xlu0 0
        %604 = vperm.xlu0 %603, %v546
        %v605 = vpop.permute.xlu0 %604
        %v607 = vld [vmem:[%s4] sm:$0xf]
        %v608 = vld [vmem:[%s4 + $0x4] sm:$0xf]
        %v609 = vld [vmem:[%s4 + $0x8] sm:$0xf]
        %v610 = vld [vmem:[%s4 + $0xc] sm:$0xf]
        %v611 = vld [vmem:[%s4 + $0x10] sm:$0xf]
        %v612 = vld [vmem:[%s4 + $0x14] sm:$0xf]
        %v613 = vld [vmem:[%s4 + $0x18] sm:$0xf]
        %v614 = vld [vmem:[%s4 + $0x1c] sm:$0xf]
        %v623 = vunpack.c.l.b16 %v607
        %v624 = vunpack.c.l.b16 %v608
        %v625 = vunpack.c.l.b16 %v609
        %v626 = vunpack.c.l.b16 %v610
        %v627 = vunpack.c.l.b16 %v611
        %v628 = vunpack.c.l.b16 %v612
        %v629 = vunpack.c.l.b16 %v613
        %v630 = vunpack.c.l.b16 %v614
        %v631 = vpack.c.b16 %v624, %v623
        %v632 = vpack.c.b16 %v626, %v625
        %v633 = vpack.c.b16 %v628, %v627
        %v634 = vpack.c.b16 %v630, %v629
        %v637 = vunpack.c.l.b16 %v495
        %v638 = vunpack.c.h.b16 %v495
        %v639 = vunpack.c.l.b16 %v496
        %v640 = vunpack.c.h.b16 %v496
        %v641 = vpack.c.b16 %v639, %v637
        %v642 = vpack.c.b16 %v640, %v638
        %vm645 = vcmask 130048
        %v647 = vsel %vm645, %v631, 0
        %v650 = vsel %vm645, %v632, 0
        %v653 = vsel %vm645, %v633, 0
        %v656 = vsel %vm645, %v634, 0
        %658 = vmatprep.subr.bf16.mxu0 %v642
        %659 = vmatpush1.bf16.msra.mxu0 %v641
        %660 = vmatprep.subr.bf16.mxu0 0
        %661 = vmatpush1.bf16.msra.mxu0 0
        %662 = vmatprep.subr.bf16.mxu0 0
        %663 = vmatpush1.bf16.msra.mxu0 0
        %664 = vmatprep.subr.bf16.mxu0 0
        %665 = vmatpush1.bf16.msra.mxu0 0
        %666 = vmatprep.subr.bf16.mxu0 0
        %667 = vmatpush1.bf16.msra.mxu0 0
        %668 = vmatprep.subr.bf16.mxu0 0
        %669 = vmatpush1.bf16.msra.mxu0 0
        %670 = vmatprep.subr.bf16.mxu0 0
        %671 = vmatpush1.bf16.msra.mxu0 0
        %672 = vmatprep.subr.bf16.mxu0 0
        %673 = vmatpush1.bf16.msra.mxu0 0
        %674 = vmatprep.subr.bf16.mxu0 0
        %675 = vmatpush1.bf16.msra.mxu0 0
        %676 = vmatprep.subr.bf16.mxu0 0
        %677 = vmatpush1.bf16.msra.mxu0 0
        %678 = vmatprep.subr.bf16.mxu0 0
        %679 = vmatpush1.bf16.msra.mxu0 0
        %680 = vmatprep.subr.bf16.mxu0 0
        %681 = vmatpush1.bf16.msra.mxu0 0
        %682 = vmatprep.subr.bf16.mxu0 0
        %683 = vmatpush1.bf16.msra.mxu0 0
        %684 = vmatprep.subr.bf16.mxu0 0
        %685 = vmatpush1.bf16.msra.mxu0 0
        %686 = vmatprep.subr.bf16.mxu0 0
        %687 = vmatpush1.bf16.msra.mxu0 0
        %688 = vmatprep.subr.bf16.mxu0 0
        %689 = vmatpush1.bf16.msra.mxu0 0
        %690 = vmatprep.mubr.bf16.mxu0 0
        %691 = vmatmul.mubr.bf16.gmra.mrb[0].mxu0 %v647
        %v692 = vpop.f32.mrb[0].mxu0
        %v693 = vadd.f32 0.0, %v692
        %v694 = vpop.f32.mrb[0].mxu0
        %v695 = vadd.f32 0.0, %v694
        %v696 = vpop.f32.mrb[0].mxu0
        %v697 = vadd.f32 0.0, %v696
        %v698 = vpop.f32.mrb[0].mxu0
        %v699 = vadd.f32 0.0, %v698
        %700 = vmatprep.mubr.bf16.mxu0 0
        %701 = vmatmul.mubr.bf16.gmra.mrb[0].mxu0 %v650
        %v702 = vpop.f32.mrb[0].mxu0
        %v703 = vadd.f32 0.0, %v702
        %v704 = vpop.f32.mrb[0].mxu0
        %v705 = vadd.f32 0.0, %v704
        %v706 = vpop.f32.mrb[0].mxu0
        %v707 = vadd.f32 0.0, %v706
        %v708 = vpop.f32.mrb[0].mxu0
        %v709 = vadd.f32 0.0, %v708
        %710 = vmatprep.mubr.bf16.mxu0 0
        %711 = vmatmul.mubr.bf16.gmra.mrb[0].mxu0 %v653
        %v712 = vpop.f32.mrb[0].mxu0
        %v713 = vadd.f32 0.0, %v712
        %v714 = vpop.f32.mrb[0].mxu0
        %v715 = vadd.f32 0.0, %v714
        %v716 = vpop.f32.mrb[0].mxu0
        %v717 = vadd.f32 0.0, %v716
        %v718 = vpop.f32.mrb[0].mxu0
        %v719 = vadd.f32 0.0, %v718
        %720 = vmatprep.mubr.bf16.mxu0 0
        %721 = vmatmul.mubr.bf16.gmra.mrb[0].mxu0 %v656
        %v722 = vpop.f32.mrb[0].mxu0
        %v723 = vadd.f32 0.0, %v722
        %v724 = vpop.f32.mrb[0].mxu0
        %v725 = vadd.f32 0.0, %v724
        %v726 = vpop.f32.mrb[0].mxu0
        %v727 = vadd.f32 0.0, %v726
        %v728 = vpop.f32.mrb[0].mxu0
        %v729 = vadd.f32 0.0, %v728
        %730 = vdwg.mxu0
        %v731 = vadd.f32 %v693, %v550
        %v732 = vadd.f32 %v695, %v550
        %v733 = vadd.f32 %v697, %v555
        %v734 = vadd.f32 %v699, %v555
        %v735 = vadd.f32 %v703, %v560
        %v736 = vadd.f32 %v705, %v560
        %v737 = vadd.f32 %v707, %v565
        %v738 = vadd.f32 %v709, %v565
        %v739 = vadd.f32 %v713, %v580
        %v740 = vadd.f32 %v715, %v580
        %v741 = vadd.f32 %v717, %v585
        %v742 = vadd.f32 %v719, %v585
        %v743 = vadd.f32 %v723, %v590
        %v744 = vadd.f32 %v725, %v590
        %v745 = vadd.f32 %v727, %v595
        %v746 = vadd.f32 %v729, %v595
        %v747 = vld [vmem:[%s5] sm:$0xf]
        %v748 = vld [vmem:[%s5 + $0x4] sm:$0xf]
        %v749 = vld [vmem:[%s5 + $0x8] sm:$0xf]
        %v750 = vld [vmem:[%s5 + $0xc] sm:$0xf]
        %v751 = vld [vmem:[%s6] sm:$0xf]
        %v752 = vld [vmem:[%s6 + $0x4] sm:$0xf]
        %v753 = vld [vmem:[%s481] sm:$0xff]
        %v754 = vld [vmem:[%s481 + $0x8] sm:$0xff]
        %v757 = vunpack.c.l.b16 %v527
        %v758 = vunpack.c.l.b16 %v534
        %v759 = vpack.c.b16 %v758, %v757
        %v761 = vmul.bf16 %v753, %v759
        %v762 = vmul.bf16 %v754, %v759
        %v767 = vunpack.c.l.b16 %v747
        %v768 = vunpack.c.l.b16 %v748
        %v769 = vunpack.c.l.b16 %v749
        %v770 = vunpack.c.l.b16 %v750
        %v771 = vpack.c.b16 %v768, %v767
        %v772 = vpack.c.b16 %v770, %v769
        %v775 = vunpack.c.l.b16 %v761
        %v776 = vunpack.c.h.b16 %v761
        %v777 = vunpack.c.l.b16 %v762
        %v778 = vunpack.c.h.b16 %v762
        %v779 = vpack.c.b16 %v777, %v775
        %v780 = vpack.c.b16 %v778, %v776
        %v784 = vsel %vm645, %v771, 0
        %v787 = vsel %vm645, %v772, 0
        %789 = vmatprep.subr.bf16.mxu0 %v780
        %790 = vmatpush1.bf16.msra.mxu0 %v779
        %791 = vmatprep.subr.bf16.mxu0 0
        %792 = vmatpush1.bf16.msra.mxu0 0
        %793 = vmatprep.subr.bf16.mxu0 0
        %794 = vmatpush1.bf16.msra.mxu0 0
        %795 = vmatprep.subr.bf16.mxu0 0
        %796 = vmatpush1.bf16.msra.mxu0 0
        %797 = vmatprep.subr.bf16.mxu0 0
        %798 = vmatpush1.bf16.msra.mxu0 0
        %799 = vmatprep.subr.bf16.mxu0 0
        %800 = vmatpush1.bf16.msra.mxu0 0
        %801 = vmatprep.subr.bf16.mxu0 0
        %802 = vmatpush1.bf16.msra.mxu0 0
        %803 = vmatprep.subr.bf16.mxu0 0
        %804 = vmatpush1.bf16.msra.mxu0 0
        %805 = vmatprep.subr.bf16.mxu0 0
        %806 = vmatpush1.bf16.msra.mxu0 0
        %807 = vmatprep.subr.bf16.mxu0 0
        %808 = vmatpush1.bf16.msra.mxu0 0
        %809 = vmatprep.subr.bf16.mxu0 0
        %810 = vmatpush1.bf16.msra.mxu0 0
        %811 = vmatprep.subr.bf16.mxu0 0
        %812 = vmatpush1.bf16.msra.mxu0 0
        %813 = vmatprep.subr.bf16.mxu0 0
        %814 = vmatpush1.bf16.msra.mxu0 0
        %815 = vmatprep.subr.bf16.mxu0 0
        %816 = vmatpush1.bf16.msra.mxu0 0
        %817 = vmatprep.subr.bf16.mxu0 0
        %818 = vmatpush1.bf16.msra.mxu0 0
        %819 = vmatprep.subr.bf16.mxu0 0
        %820 = vmatpush1.bf16.msra.mxu0 0
        %821 = vmatprep.mubr.bf16.mxu0 0
        %822 = vmatmul.mubr.bf16.gmra.mrb[0].mxu0 %v784
        %v823 = vpop.f32.mrb[0].mxu0
        %v824 = vadd.f32 0.0, %v823
        %v825 = vpop.f32.mrb[0].mxu0
        %v826 = vadd.f32 0.0, %v825
        %v827 = vpop.f32.mrb[0].mxu0
        %v828 = vadd.f32 0.0, %v827
        %v829 = vpop.f32.mrb[0].mxu0
        %v830 = vadd.f32 0.0, %v829
        %831 = vmatprep.mubr.bf16.mxu0 0
        %832 = vmatmul.mubr.bf16.gmra.mrb[0].mxu0 %v787
        %v833 = vpop.f32.mrb[0].mxu0
        %v834 = vadd.f32 0.0, %v833
        %v835 = vpop.f32.mrb[0].mxu0
        %v836 = vadd.f32 0.0, %v835
        %v837 = vpop.f32.mrb[0].mxu0
        %v838 = vadd.f32 0.0, %v837
        %v839 = vpop.f32.mrb[0].mxu0
        %v840 = vadd.f32 0.0, %v839
        %841 = vdwg.mxu0
        %v842 = vadd.f32 %v731, %v824
        %v843 = vadd.f32 %v732, %v826
        %v844 = vadd.f32 %v733, %v828
        %v845 = vadd.f32 %v734, %v830
        %v846 = vadd.f32 %v735, %v834
        %v847 = vadd.f32 %v736, %v836
        %v848 = vadd.f32 %v737, %v838
        %v849 = vadd.f32 %v738, %v840
        %v850 = vmax.f32 %v842, 0.0
        %v851 = vmax.f32 %v843, 0.0
        %v852 = vmax.f32 %v844, 0.0
        %v853 = vmax.f32 %v845, 0.0
        %v854 = vmax.f32 %v846, 0.0
        %v855 = vmax.f32 %v847, 0.0
        %v856 = vmax.f32 %v848, 0.0
        %v857 = vmax.f32 %v849, 0.0
        %v858 = vpack.c.bf16 %v852, %v850
        %v859 = vpack.c.bf16 %v853, %v851
        %v860 = vpack.c.bf16 %v856, %v854
        %v861 = vpack.c.bf16 %v857, %v855
        %v864 = vunpack.c.l.b16 %v751
        %v865 = vunpack.c.l.b16 %v752
        %v866 = vpack.c.b16 %v865, %v864
        %vm867 = vcmask 261120
        %v869 = vsel %vm867, %v866, 0
        %871 = vmatprep.subr.bf16.mxu0 %v859
        %872 = vmatpush1.bf16.msra.mxu0 %v858
        %873 = vmatprep.subr.bf16.mxu0 %v861
        %874 = vmatpush1.bf16.msra.mxu0 %v860
        %875 = vmatprep.subr.bf16.mxu0 0
        %876 = vmatpush1.bf16.msra.mxu0 0
        %877 = vmatprep.subr.bf16.mxu0 0
        %878 = vmatpush1.bf16.msra.mxu0 0
        %879 = vmatprep.subr.bf16.mxu0 0
        %880 = vmatpush1.bf16.msra.mxu0 0
        %881 = vmatprep.subr.bf16.mxu0 0
        %882 = vmatpush1.bf16.msra.mxu0 0
        %883 = vmatprep.subr.bf16.mxu0 0
        %884 = vmatpush1.bf16.msra.mxu0 0
        %885 = vmatprep.subr.bf16.mxu0 0
        %886 = vmatpush1.bf16.msra.mxu0 0
        %887 = vmatprep.subr.bf16.mxu0 0
        %888 = vmatpush1.bf16.msra.mxu0 0
        %889 = vmatprep.subr.bf16.mxu0 0
        %890 = vmatpush1.bf16.msra.mxu0 0
        %891 = vmatprep.subr.bf16.mxu0 0
        %892 = vmatpush1.bf16.msra.mxu0 0
        %893 = vmatprep.subr.bf16.mxu0 0
        %894 = vmatpush1.bf16.msra.mxu0 0
        %895 = vmatprep.subr.bf16.mxu0 0
        %896 = vmatpush1.bf16.msra.mxu0 0
        %897 = vmatprep.subr.bf16.mxu0 0
        %898 = vmatpush1.bf16.msra.mxu0 0
        %899 = vmatprep.subr.bf16.mxu0 0
        %900 = vmatpush1.bf16.msra.mxu0 0
        %901 = vmatprep.subr.bf16.mxu0 0
        %902 = vmatpush1.bf16.msra.mxu0 0
        %903 = vmatprep.mubr.bf16.mxu0 0
        %904 = vmatmul.mubr.bf16.gmra.mrb[0].mxu0 %v869
        %v905 = vpop.f32.mrb[0].mxu0
        %v906 = vadd.f32 %v570, %v905
        %v907 = vpop.f32.mrb[0].mxu0
        %v908 = vadd.f32 %v570, %v907
        %v909 = vpop.f32.mrb[0].mxu0
        %v910 = vadd.f32 %v575, %v909
        %v911 = vpop.f32.mrb[0].mxu0
        %v912 = vadd.f32 %v575, %v911
        %913 = vdwg.mxu0
        %v914 = vmax.f32 %v906, 0.0
        %v915 = vmax.f32 %v908, 0.0
        %v916 = vmax.f32 %v910, 0.0
        %v917 = vmax.f32 %v912, 0.0
        %v918 = vadd.f32 %v914, 0.0
        %v919 = vadd.f32 %v915, 0.0
        %v920 = vadd.f32 %v916, 0.0
        %v921 = vadd.f32 %v917, 0.0
        %v922 = vld [vmem:[%s491] sm:$0xff]
        %v923 = vld [vmem:[%s491 + $0x8] sm:$0xff]
        %v924 = vmul.bf16 %v922, %v759
        %v925 = vmul.bf16 %v923, %v759
        %v928 = vunpack.c.l.b16 %v924
        %v929 = vunpack.c.h.b16 %v924
        %v930 = vunpack.c.l.b16 %v925
        %v931 = vunpack.c.h.b16 %v925
        %v932 = vpack.c.b16 %v930, %v928
        %v933 = vpack.c.b16 %v931, %v929
        %936 = vmatprep.subr.bf16.mxu0 %v933
        %937 = vmatpush1.bf16.msra.mxu0 %v932
        %938 = vmatprep.subr.bf16.mxu0 0
        %939 = vmatpush1.bf16.msra.mxu0 0
        %940 = vmatprep.subr.bf16.mxu0 0
        %941 = vmatpush1.bf16.msra.mxu0 0
        %942 = vmatprep.subr.bf16.mxu0 0
        %943 = vmatpush1.bf16.msra.mxu0 0
        %944 = vmatprep.subr.bf16.mxu0 0
        %945 = vmatpush1.bf16.msra.mxu0 0
        %946 = vmatprep.subr.bf16.mxu0 0
        %947 = vmatpush1.bf16.msra.mxu0 0
        %948 = vmatprep.subr.bf16.mxu0 0
        %949 = vmatpush1.bf16.msra.mxu0 0
        %950 = vmatprep.subr.bf16.mxu0 0
        %951 = vmatpush1.bf16.msra.mxu0 0
        %952 = vmatprep.subr.bf16.mxu0 0
        %953 = vmatpush1.bf16.msra.mxu0 0
        %954 = vmatprep.subr.bf16.mxu0 0
        %955 = vmatpush1.bf16.msra.mxu0 0
        %956 = vmatprep.subr.bf16.mxu0 0
        %957 = vmatpush1.bf16.msra.mxu0 0
        %958 = vmatprep.subr.bf16.mxu0 0
        %959 = vmatpush1.bf16.msra.mxu0 0
        %960 = vmatprep.subr.bf16.mxu0 0
        %961 = vmatpush1.bf16.msra.mxu0 0
        %962 = vmatprep.subr.bf16.mxu0 0
        %963 = vmatpush1.bf16.msra.mxu0 0
        %964 = vmatprep.subr.bf16.mxu0 0
        %965 = vmatpush1.bf16.msra.mxu0 0
        %966 = vmatprep.subr.bf16.mxu0 0
        %967 = vmatpush1.bf16.msra.mxu0 0
        %968 = vmatprep.mubr.bf16.mxu0 0
        %969 = vmatmul.mubr.bf16.gmra.mrb[0].mxu0 %v784
        %v970 = vpop.f32.mrb[0].mxu0
        %v971 = vadd.f32 0.0, %v970
        %v972 = vpop.f32.mrb[0].mxu0
        %v973 = vadd.f32 0.0, %v972
        %v974 = vpop.f32.mrb[0].mxu0
        %v975 = vadd.f32 0.0, %v974
        %v976 = vpop.f32.mrb[0].mxu0
        %v977 = vadd.f32 0.0, %v976
        %978 = vmatprep.mubr.bf16.mxu0 0
        %979 = vmatmul.mubr.bf16.gmra.mrb[0].mxu0 %v787
        %v980 = vpop.f32.mrb[0].mxu0
        %v981 = vadd.f32 0.0, %v980
        %v982 = vpop.f32.mrb[0].mxu0
        %v983 = vadd.f32 0.0, %v982
        %v984 = vpop.f32.mrb[0].mxu0
        %v985 = vadd.f32 0.0, %v984
        %v986 = vpop.f32.mrb[0].mxu0
        %v987 = vadd.f32 0.0, %v986
        %988 = vdwg.mxu0
        %v989 = vadd.f32 %v731, %v971
        %v990 = vadd.f32 %v732, %v973
        %v991 = vadd.f32 %v733, %v975
        %v992 = vadd.f32 %v734, %v977
        %v993 = vadd.f32 %v735, %v981
        %v994 = vadd.f32 %v736, %v983
        %v995 = vadd.f32 %v737, %v985
        %v996 = vadd.f32 %v738, %v987
        %v997 = vmax.f32 %v989, 0.0
        %v998 = vmax.f32 %v990, 0.0
        %v999 = vmax.f32 %v991, 0.0
        %v1000 = vmax.f32 %v992, 0.0
        %v1001 = vmax.f32 %v993, 0.0
        %v1002 = vmax.f32 %v994, 0.0
        %v1003 = vmax.f32 %v995, 0.0
        %v1004 = vmax.f32 %v996, 0.0
        %v1005 = vpack.c.bf16 %v999, %v997
        %v1006 = vpack.c.bf16 %v1000, %v998
        %v1007 = vpack.c.bf16 %v1003, %v1001
        %v1008 = vpack.c.bf16 %v1004, %v1002
        %1009 = vmatprep.subr.bf16.mxu0 %v1006
        %1010 = vmatpush1.bf16.msra.mxu0 %v1005
        %1011 = vmatprep.subr.bf16.mxu0 %v1008
        %1012 = vmatpush1.bf16.msra.mxu0 %v1007
        %1013 = vmatprep.subr.bf16.mxu0 0
        %1014 = vmatpush1.bf16.msra.mxu0 0
        %1015 = vmatprep.subr.bf16.mxu0 0
        %1016 = vmatpush1.bf16.msra.mxu0 0
        %1017 = vmatprep.subr.bf16.mxu0 0
        %1018 = vmatpush1.bf16.msra.mxu0 0
        %1019 = vmatprep.subr.bf16.mxu0 0
        %1020 = vmatpush1.bf16.msra.mxu0 0
        %1021 = vmatprep.subr.bf16.mxu0 0
        %1022 = vmatpush1.bf16.msra.mxu0 0
        %1023 = vmatprep.subr.bf16.mxu0 0
        %1024 = vmatpush1.bf16.msra.mxu0 0
        %1025 = vmatprep.subr.bf16.mxu0 0
        %1026 = vmatpush1.bf16.msra.mxu0 0
        %1027 = vmatprep.subr.bf16.mxu0 0
        %1028 = vmatpush1.bf16.msra.mxu0 0
        %1029 = vmatprep.subr.bf16.mxu0 0
        %1030 = vmatpush1.bf16.msra.mxu0 0
        %1031 = vmatprep.subr.bf16.mxu0 0
        %1032 = vmatpush1.bf16.msra.mxu0 0
        %1033 = vmatprep.subr.bf16.mxu0 0
        %1034 = vmatpush1.bf16.msra.mxu0 0
        %1035 = vmatprep.subr.bf16.mxu0 0
        %1036 = vmatpush1.bf16.msra.mxu0 0
        %1037 = vmatprep.subr.bf16.mxu0 0
        %1038 = vmatpush1.bf16.msra.mxu0 0
        %1039 = vmatprep.subr.bf16.mxu0 0
        %1040 = vmatpush1.bf16.msra.mxu0 0
        %1041 = vmatprep.mubr.bf16.mxu0 0
        %1042 = vmatmul.mubr.bf16.gmra.mrb[0].mxu0 %v869
        %v1043 = vpop.f32.mrb[0].mxu0
        %v1044 = vadd.f32 %v570, %v1043
        %v1045 = vpop.f32.mrb[0].mxu0
        %v1046 = vadd.f32 %v570, %v1045
        %v1047 = vpop.f32.mrb[0].mxu0
        %v1048 = vadd.f32 %v575, %v1047
        %v1049 = vpop.f32.mrb[0].mxu0
        %v1050 = vadd.f32 %v575, %v1049
        %1051 = vdwg.mxu0
        %v1052 = vmax.f32 %v1044, 0.0
        %v1053 = vmax.f32 %v1046, 0.0
        %v1054 = vmax.f32 %v1048, 0.0
        %v1055 = vmax.f32 %v1050, 0.0
        %v1056 = vadd.f32 %v918, %v1052
        %v1057 = vadd.f32 %v919, %v1053
        %v1058 = vadd.f32 %v920, %v1054
        %v1059 = vadd.f32 %v921, %v1055
        %v1060 = vld [vmem:[%s7] sm:$0xf]
        %v1061 = vld [vmem:[%s7 + $0x4] sm:$0xf]
        %v1062 = vld [vmem:[%s7 + $0x8] sm:$0xf]
        %v1063 = vld [vmem:[%s7 + $0xc] sm:$0xf]
        %v1064 = vld [vmem:[%s7 + $0x10] sm:$0xf]
        %v1065 = vld [vmem:[%s7 + $0x14] sm:$0xf]
        %v1066 = vpack.c.bf16 %v1058, %v1056
        %v1067 = vpack.c.bf16 %v1059, %v1057
        %v1074 = vunpack.c.l.b16 %v1060
        %v1075 = vunpack.c.l.b16 %v1061
        %v1076 = vunpack.c.l.b16 %v1062
        %v1077 = vunpack.c.l.b16 %v1063
        %v1078 = vunpack.c.l.b16 %v1064
        %v1079 = vunpack.c.l.b16 %v1065
        %v1080 = vpack.c.b16 %v1075, %v1074
        %v1081 = vpack.c.b16 %v1077, %v1076
        %v1082 = vpack.c.b16 %v1079, %v1078
        %v1084 = vsel %vm645, %v1080, 0
        %v1087 = vsel %vm645, %v1081, 0
        %v1090 = vsel %vm645, %v1082, 0
        %1092 = vmatprep.subr.bf16.mxu0 %v1067
        %1093 = vmatpush1.bf16.msra.mxu0 %v1066
        %1094 = vmatprep.subr.bf16.mxu0 0
        %1095 = vmatpush1.bf16.msra.mxu0 0
        %1096 = vmatprep.subr.bf16.mxu0 0
        %1097 = vmatpush1.bf16.msra.mxu0 0
        %1098 = vmatprep.subr.bf16.mxu0 0
        %1099 = vmatpush1.bf16.msra.mxu0 0
        %1100 = vmatprep.subr.bf16.mxu0 0
        %1101 = vmatpush1.bf16.msra.mxu0 0
        %1102 = vmatprep.subr.bf16.mxu0 0
        %1103 = vmatpush1.bf16.msra.mxu0 0
        %1104 = vmatprep.subr.bf16.mxu0 0
        %1105 = vmatpush1.bf16.msra.mxu0 0
        %1106 = vmatprep.subr.bf16.mxu0 0
        %1107 = vmatpush1.bf16.msra.mxu0 0
        %1108 = vmatprep.subr.bf16.mxu0 0
        %1109 = vmatpush1.bf16.msra.mxu0 0
        %1110 = vmatprep.subr.bf16.mxu0 0
        %1111 = vmatpush1.bf16.msra.mxu0 0
        %1112 = vmatprep.subr.bf16.mxu0 0
        %1113 = vmatpush1.bf16.msra.mxu0 0
        %1114 = vmatprep.subr.bf16.mxu0 0
        %1115 = vmatpush1.bf16.msra.mxu0 0
        %1116 = vmatprep.subr.bf16.mxu0 0
        %1117 = vmatpush1.bf16.msra.mxu0 0
        %1118 = vmatprep.subr.bf16.mxu0 0
        %1119 = vmatpush1.bf16.msra.mxu0 0
        %1120 = vmatprep.subr.bf16.mxu0 0
        %1121 = vmatpush1.bf16.msra.mxu0 0
        %1122 = vmatprep.subr.bf16.mxu0 0
        %1123 = vmatpush1.bf16.msra.mxu0 0
        %1124 = vmatprep.mubr.bf16.mxu0 0
        %1125 = vmatmul.mubr.bf16.gmra.mrb[0].mxu0 %v1084
        %v1126 = vpop.f32.mrb[0].mxu0
        %v1127 = vadd.f32 0.0, %v1126
        %v1128 = vpop.f32.mrb[0].mxu0
        %v1129 = vadd.f32 0.0, %v1128
        %v1130 = vpop.f32.mrb[0].mxu0
        %v1131 = vadd.f32 0.0, %v1130
        %v1132 = vpop.f32.mrb[0].mxu0
        %v1133 = vadd.f32 0.0, %v1132
        %1134 = vmatprep.mubr.bf16.mxu0 0
        %1135 = vmatmul.mubr.bf16.gmra.mrb[0].mxu0 %v1087
        %v1136 = vpop.f32.mrb[0].mxu0
        %v1137 = vadd.f32 0.0, %v1136
        %v1138 = vpop.f32.mrb[0].mxu0
        %v1139 = vadd.f32 0.0, %v1138
        %v1140 = vpop.f32.mrb[0].mxu0
        %v1141 = vadd.f32 0.0, %v1140
        %v1142 = vpop.f32.mrb[0].mxu0
        %v1143 = vadd.f32 0.0, %v1142
        %1144 = vmatprep.mubr.bf16.mxu0 0
        %1145 = vmatmul.mubr.bf16.gmra.mrb[0].mxu0 %v1090
        %v1146 = vpop.f32.mrb[0].mxu0
        %v1147 = vadd.f32 0.0, %v1146
        %v1148 = vpop.f32.mrb[0].mxu0
        %v1149 = vadd.f32 0.0, %v1148
        %v1150 = vpop.f32.mrb[0].mxu0
        %v1151 = vadd.f32 0.0, %v1150
        %v1152 = vpop.f32.mrb[0].mxu0
        %v1153 = vadd.f32 0.0, %v1152
        %1154 = vdwg.mxu0
        %v1155 = vadd.f32 %v1127, %v739
        %v1156 = vadd.f32 %v1129, %v740
        %v1157 = vadd.f32 %v1131, %v741
        %v1158 = vadd.f32 %v1133, %v742
        %v1159 = vadd.f32 %v1137, %v743
        %v1160 = vadd.f32 %v1139, %v744
        %v1161 = vadd.f32 %v1141, %v745
        %v1162 = vadd.f32 %v1143, %v746
        %v1163 = vxor.u32 %v1155, 2147483648
        %v1164 = vxor.u32 %v1156, 2147483648
        %v1165 = vxor.u32 %v1157, 2147483648
        %v1166 = vxor.u32 %v1158, 2147483648
        %v1167 = vmul.f32 %v1163, 1.442695
        %v1168 = vpow.pop %v1167
        %v1169 = vmul.f32 %v1164, 1.442695
        %v1170 = vpow.pop %v1169
        %v1171 = vmul.f32 %v1165, 1.442695
        %v1172 = vpow.pop %v1171
        %v1173 = vmul.f32 %v1166, 1.442695
        %v1174 = vpow.pop %v1173
        %v1175 = vadd.f32 %v1168, 1.0
        %v1176 = vadd.f32 %v1170, 1.0
        %v1177 = vadd.f32 %v1172, 1.0
        %v1178 = vadd.f32 %v1174, 1.0
        %v1179 = vrcp.pop %v1175
        %v1180 = vmul.f32 1.0, %v1179
        %v1181 = vrcp.pop %v1176
        %v1182 = vmul.f32 1.0, %v1181
        %v1183 = vrcp.pop %v1177
        %v1184 = vmul.f32 1.0, %v1183
        %v1185 = vrcp.pop %v1178
        %v1186 = vmul.f32 1.0, %v1185
        %v1187 = vxor.u32 %v1159, 2147483648
        %v1188 = vxor.u32 %v1160, 2147483648
        %v1189 = vxor.u32 %v1161, 2147483648
        %v1190 = vxor.u32 %v1162, 2147483648
        %v1191 = vmul.f32 %v1187, 1.442695
        %v1192 = vpow.pop %v1191
        %v1193 = vmul.f32 %v1188, 1.442695
        %v1194 = vpow.pop %v1193
        %v1195 = vmul.f32 %v1189, 1.442695
        %v1196 = vpow.pop %v1195
        %v1197 = vmul.f32 %v1190, 1.442695
        %v1198 = vpow.pop %v1197
        %v1199 = vadd.f32 %v1192, 1.0
        %v1200 = vadd.f32 %v1194, 1.0
        %v1201 = vadd.f32 %v1196, 1.0
        %v1202 = vadd.f32 %v1198, 1.0
        %v1203 = vrcp.pop %v1199
        %v1204 = vmul.f32 1.0, %v1203
        %v1205 = vrcp.pop %v1200
        %v1206 = vmul.f32 1.0, %v1205
        %v1207 = vrcp.pop %v1201
        %v1208 = vmul.f32 1.0, %v1207
        %v1209 = vrcp.pop %v1202
        %v1210 = vmul.f32 1.0, %v1209
        %v1211 = vunpack.c.l.bf16 %v495
        %v1212 = vunpack.c.h.bf16 %v495
        %v1213 = vunpack.c.l.bf16 %v496
        %v1214 = vunpack.c.h.bf16 %v496
        %v1215 = vmul.f32 %v1180, %v1211
        %v1216 = vmul.f32 %v1182, %v1212
        %v1217 = vmul.f32 %v1184, %v1213
        %v1218 = vmul.f32 %v1186, %v1214
        %v1219 = vpack.c.bf16 %v1217, %v1215
        %v1220 = vpack.c.bf16 %v1218, %v1216
        %v1221 = vld [vmem:[%s8] sm:$0xf]
        %v1222 = vld [vmem:[%s8 + $0x4] sm:$0xf]
        %v1225 = vunpack.c.l.b16 %v1221
        %v1226 = vunpack.c.l.b16 %v1222
        %v1227 = vpack.c.b16 %v1226, %v1225
        %v1229 = vsel %vm645, %v1227, 0
        %1231 = vmatprep.subr.bf16.mxu0 %v1220
        %1232 = vmatpush1.bf16.msra.mxu0 %v1219
        %1233 = vmatprep.subr.bf16.mxu0 0
        %1234 = vmatpush1.bf16.msra.mxu0 0
        %1235 = vmatprep.subr.bf16.mxu0 0
        %1236 = vmatpush1.bf16.msra.mxu0 0
        %1237 = vmatprep.subr.bf16.mxu0 0
        %1238 = vmatpush1.bf16.msra.mxu0 0
        %1239 = vmatprep.subr.bf16.mxu0 0
        %1240 = vmatpush1.bf16.msra.mxu0 0
        %1241 = vmatprep.subr.bf16.mxu0 0
        %1242 = vmatpush1.bf16.msra.mxu0 0
        %1243 = vmatprep.subr.bf16.mxu0 0
        %1244 = vmatpush1.bf16.msra.mxu0 0
        %1245 = vmatprep.subr.bf16.mxu0 0
        %1246 = vmatpush1.bf16.msra.mxu0 0
        %1247 = vmatprep.subr.bf16.mxu0 0
        %1248 = vmatpush1.bf16.msra.mxu0 0
        %1249 = vmatprep.subr.bf16.mxu0 0
        %1250 = vmatpush1.bf16.msra.mxu0 0
        %1251 = vmatprep.subr.bf16.mxu0 0
        %1252 = vmatpush1.bf16.msra.mxu0 0
        %1253 = vmatprep.subr.bf16.mxu0 0
        %1254 = vmatpush1.bf16.msra.mxu0 0
        %1255 = vmatprep.subr.bf16.mxu0 0
        %1256 = vmatpush1.bf16.msra.mxu0 0
        %1257 = vmatprep.subr.bf16.mxu0 0
        %1258 = vmatpush1.bf16.msra.mxu0 0
        %1259 = vmatprep.subr.bf16.mxu0 0
        %1260 = vmatpush1.bf16.msra.mxu0 0
        %1261 = vmatprep.subr.bf16.mxu0 0
        %1262 = vmatpush1.bf16.msra.mxu0 0
        %1263 = vmatprep.mubr.bf16.mxu0 0
        %1264 = vmatmul.mubr.bf16.gmra.mrb[0].mxu0 %v1229
        %v1265 = vpop.f32.mrb[0].mxu0
        %v1266 = vadd.f32 0.0, %v1265
        %v1267 = vpop.f32.mrb[0].mxu0
        %v1268 = vadd.f32 0.0, %v1267
        %v1269 = vpop.f32.mrb[0].mxu0
        %v1270 = vadd.f32 0.0, %v1269
        %v1271 = vpop.f32.mrb[0].mxu0
        %v1272 = vadd.f32 0.0, %v1271
        %1273 = vdwg.mxu0
        %v1274 = vadd.f32 %v1147, %v1266
        %v1275 = vadd.f32 %v1149, %v1268
        %v1276 = vadd.f32 %v1151, %v1270
        %v1277 = vadd.f32 %v1153, %v1272
        %v1278 = vadd.f32 %v1274, %v600
        %v1279 = vadd.f32 %v1275, %v600
        %v1280 = vadd.f32 %v1276, %v605
        %v1281 = vadd.f32 %v1277, %v605
        %v1282 = vtanh.pop %v1278
        %v1283 = vtanh.pop %v1279
        %v1284 = vtanh.pop %v1280
        %v1285 = vtanh.pop %v1281
        %v1286 = vsub.f32 %v1282, %v1211
        %v1287 = vsub.f32 %v1283, %v1212
        %v1288 = vsub.f32 %v1284, %v1213
        %v1289 = vsub.f32 %v1285, %v1214
        %v1290 = vmul.f32 %v1204, %v1286
        %v1291 = vmul.f32 %v1206, %v1287
        %v1292 = vmul.f32 %v1208, %v1288
        %v1293 = vmul.f32 %v1210, %v1289
        %v1294 = vadd.f32 %v1211, %v1290
        %v1295 = vadd.f32 %v1212, %v1291
        %v1296 = vadd.f32 %v1213, %v1292
        %v1297 = vadd.f32 %v1214, %v1293
        %1298 = vst [vmem:[%s453] sm:$0xff] %v1294
        %1299 = vst [vmem:[%s453 + $0x8] sm:$0xff] %v1295
        %1300 = vst [vmem:[%s453 + $0x10] sm:$0xff] %v1296
        %1301 = vst [vmem:[%s453 + $0x18] sm:$0xff] %v1297
        %s1302 = sand.u32 %s284, 1
        %s1303 = scalar_lea.sflag [#allocation3], %s1302
        %s1304 = sand.u32 %s284, 1
        %s1305 = smul.addr %s1304, 32
        %s1306 = scalar_lea.vmem [#allocation2], %s1305
        // Predicated region
        $region61: #{tpu_custom_call.1} parent=59 // pred_check
          %p1307 = pneg %p294
        $region62: #{tpu_custom_call.1} parent=59 // pred_check_branch
          %1309 = sbr.rel (%p1307) target = $region64
        $region63: #{tpu_custom_call.1} parent=59 // pred_region
          %s1310 = smul.u32 2, %s29
          %s1312 = ssub.s32 512, 512
          %1313 = vsyncadd %s1303, %s1312
          %s1314 = smul.addr %s28, 4
          %s1315 = sadd.s32 %s1310, %s1314
          %s1316 = smul.addr %s1315, 128
          %s1317 = scalar_lea.hbm %s10, %s1316
          %s1318 = sshll.u32 %s1306, 4
          %s1319 = int_to_ptr.vmem [resolvable:$true] %s1318
          %1324 = dma.vmem_to_hbm [thread:$0]  %s1319, 512, %s1317, %s1303, 256, 256, 16
        $region64: #{tpu_custom_call.1} parent=59 // pred_fallthru
          _
      $region60: #{tpu_custom_call.1} parent=5 // pred_fallthru
        _
      %p1325 = scmp.le.s32.totalorder 2, %s19
      // Predicated region
      $region65: #{tpu_custom_call.1} parent=5 // pred_check
        %p1326 = pneg %p1325
      $region66: #{tpu_custom_call.1} parent=5 // pred_check_branch
        %1328 = sbr.rel (%p1326) target = $region68
      $region67: #{tpu_custom_call.1} parent=5 // pred_region
        %s1329 = ssub.s32 %s19, 2
        // Predicated region
        $region69: #{tpu_custom_call.1} parent=67 // pred_check
          %p1330 = pneg %p300
        $region70: #{tpu_custom_call.1} parent=67 // pred_check_branch
          %1332 = sbr.rel (%p1330) target = $region72
        $region71: #{tpu_custom_call.1} parent=67 // pred_region
          %s1333 = sand.u32 %s285, 1
          %s1334 = scalar_lea.sflag [#allocation3], %s1333
          %s1335 = sand.u32 %s285, 1
          %s1336 = smul.addr %s1335, 32
          %s1337 = scalar_lea.vmem [#allocation2], %s1336
          %1338 = dma.done %s1334, 512
        $region72: #{tpu_custom_call.1} parent=67 // pred_fallthru
          _
      $region68: #{tpu_custom_call.1} parent=5 // pred_fallthru
        _
    $region6: #{tpu_custom_call.1} parent=1 // loop_footer
      %s23 = sadd.s32 1, %s19
    $region7: #{tpu_custom_call.1} parent=1 // loop_footer_branch
      %18 = sbr.rel target = $region3
    $region8: #{tpu_custom_call.1} parent=1 // loop_exit
      _
    %1339 = vsyncpa [#allocation3], 1
    %s1340 = scalar_lea.sflag [#allocation3], 1
    %1341 = vsyncpa %s1340, 1

</llo_original>
